<compile_context>
chip_gen: v5e
topology: v5e:2x2
jax: 0.10.0
libtpu: 0.0.40
codegen_flags: <defaults>
</compile_context>

<pallas_src>
import functools

import jax
import jax.numpy as jnp
from jax.experimental import pallas as pl
from jax.experimental.pallas import tpu as pltpu


# ---------------------------------------------------------------------------
# Pallas kernel: one full transformer encoder block on a (B, T, H) VMEM block.
# ---------------------------------------------------------------------------
def encoder_block_kernel(x_ref,                    # (B, T, H)   f32
                         vlen_ref,                 # (G, 1, 1)   int32, per (b,h) group
                         wq_ref, bq_ref,           # (nh, H, hd) bf16 / (nh, 1, hd) f32
                         wk_ref, bk_ref,
                         wv_ref, bv_ref,
                         wo_ref, bo_ref,           # (nh, hd, H) bf16 / (1, 1, H) f32
                         g1_ref, beta1_ref,        # (1, 1, H)   f32
                         w1_ref, b1_ref,           # (H, Fh) bf16 / (1, Fh) f32
                         w2_ref, b2_ref,           # (Fh, H) bf16 / (1, H)  f32
                         g2_ref, beta2_ref,        # (1, 1, H)   f32
                         out_ref,                  # (B, T, H)   f32
                         *, num_heads):
    B, T, H = x_ref.shape
    nh = num_heads
    hd = H // nh
    G = B * nh                                     # (batch, head) groups

    x = x_ref[...]                                 # f32 residual path
    x_bf = x.astype(jnp.bfloat16)

    def tile_over_batch(a):                        # (nh, m, n) -> (B*nh, m, n)
        return jnp.broadcast_to(a[None], (B,) + a.shape).reshape((G,) + a.shape[1:])

    # x replicated per (batch, head) group so every attention stage is a plain
    # leading-batch-dim batched matmul (no lane slicing / concatenation).
    x_g = jnp.broadcast_to(x_bf[:, None], (B, nh, T, H)).reshape(G, T, H)

    # --- QKV projections (bf16 MXU, f32 acc) -----------------------------------
    def project(w_ref, b_ref):                     # -> (G, T, hd) f32
        return (jnp.einsum('gtk,gkd->gtd', x_g, tile_over_batch(w_ref[...]),
                           preferred_element_type=jnp.float32)
                + tile_over_batch(b_ref[...]))

    q = project(wq_ref, bq_ref)
    k = project(wk_ref, bk_ref)
    v = project(wv_ref, bv_ref)

    # --- scaled dot-product attention with key-length masking ------------------
    scale = float(hd) ** -0.5
    s = jnp.einsum('gqd,gkd->gqk',
                   q.astype(jnp.bfloat16), k.astype(jnp.bfloat16),
                   preferred_element_type=jnp.float32) * scale      # (G, T, T)

    key_idx = jax.lax.broadcasted_iota(jnp.int32, (G, T, T), 2)
    s = jnp.where(key_idx < vlen_ref[...], s, jnp.float32(-1e6))    # d2l masked_softmax

    s = s - s.max(axis=-1, keepdims=True)
    p = jnp.exp(s)
    attn = p * pl.reciprocal(p.sum(axis=-1, keepdims=True), approx=True)

    o = jnp.einsum('gqk,gkd->gqd',
                   attn.astype(jnp.bfloat16), v.astype(jnp.bfloat16),
                   preferred_element_type=jnp.float32)               # (G, T, hd)
    # per-head output projection summed over heads == concat-heads @ Wo
    proj = jnp.einsum('gtd,gdo->gto',
                      o.astype(jnp.bfloat16), tile_over_batch(wo_ref[...]),
                      preferred_element_type=jnp.float32)            # (G, T, H)
    attn_out = proj.reshape(B, nh, T, H).sum(axis=1) + bo_ref[...]   # (B, T, H)

    # --- AddNorm 1 (dropout = identity in eval) --------------------------------
    y = x + attn_out
    mu = y.mean(axis=-1, keepdims=True)
    var = ((y - mu) ** 2).mean(axis=-1, keepdims=True)
    y = (y - mu) * jax.lax.rsqrt(var + 1e-5) * g1_ref[...] + beta1_ref[...]

    # --- position-wise FFN: flattened 2-D matmuls (no per-batch weight copies) -
    y2d = y.reshape(B * T, H).astype(jnp.bfloat16)
    h1 = jnp.dot(y2d, w1_ref[...], preferred_element_type=jnp.float32) + b1_ref[...]
    h1 = jnp.maximum(h1, 0.0)
    ffn = (jnp.dot(h1.astype(jnp.bfloat16), w2_ref[...],
                   preferred_element_type=jnp.float32)
           + b2_ref[...]).reshape(B, T, H)

    # --- AddNorm 2 --------------------------------------------------------------
    z = y + ffn
    mu2 = z.mean(axis=-1, keepdims=True)
    var2 = ((z - mu2) ** 2).mean(axis=-1, keepdims=True)
    out_ref[...] = (z - mu2) * jax.lax.rsqrt(var2 + 1e-5) * g2_ref[...] + beta2_ref[...]


def _full_spec(shape):
    n = len(shape)
    return pl.BlockSpec(shape, lambda i, _n=n: (0,) * _n)


def prep_block_params(p, num_heads):
    """Split attention weights per head and cast matmul operands to bf16 (plain JAX)."""
    H = p["wq"].shape[0]
    Fh = p["w1"].shape[1]
    nh = num_heads
    hd = H // nh
    bf, f32 = jnp.bfloat16, jnp.float32

    def head_w(w):      # (H, H) column-split per head -> (nh, H, hd)
        return w.reshape(H, nh, hd).transpose(1, 0, 2).astype(bf)

    def head_b(b):      # (1, H) -> (nh, 1, hd)
        return b.reshape(nh, hd)[:, None, :].astype(f32)

    return dict(
        wq=head_w(p["wq"]), bq=head_b(p["bq"]),
        wk=head_w(p["wk"]), bk=head_b(p["bk"]),
        wv=head_w(p["wv"]), bv=head_b(p["bv"]),
        wo=p["wo"].reshape(nh, hd, H).astype(bf),
        bo=p["bo"].reshape(1, 1, H).astype(f32),
        g1=p["g1"].reshape(1, 1, H).astype(f32),
        beta1=p["beta1"].reshape(1, 1, H).astype(f32),
        w1=p["w1"].astype(bf), b1=p["b1"].reshape(1, Fh).astype(f32),
        w2=p["w2"].astype(bf), b2=p["b2"].reshape(1, H).astype(f32),
        g2=p["g2"].reshape(1, 1, H).astype(f32),
        beta2=p["beta2"].reshape(1, 1, H).astype(f32),
    )


def encoder_block(x, vlen_g, bp, num_heads):
    B, T, H = x.shape
    nh = num_heads
    hd = H // nh
    Fh = bp["w1"].shape[1]
    G = B * nh
    kernel = functools.partial(encoder_block_kernel, num_heads=num_heads)

    in_specs = [
        _full_spec((B, T, H)),                                   # x
        _full_spec((G, 1, 1)),                                   # valid lens per group
        _full_spec((nh, H, hd)), _full_spec((nh, 1, hd)),        # Wq, bq
        _full_spec((nh, H, hd)), _full_spec((nh, 1, hd)),        # Wk, bk
        _full_spec((nh, H, hd)), _full_spec((nh, 1, hd)),        # Wv, bv
        _full_spec((nh, hd, H)), _full_spec((1, 1, H)),          # Wo, bo
        _full_spec((1, 1, H)), _full_spec((1, 1, H)),            # ln1 gamma, beta
        _full_spec((H, Fh)), _full_spec((1, Fh)),                # ffn W1, b1
        _full_spec((Fh, H)), _full_spec((1, H)),                 # ffn W2, b2
        _full_spec((1, 1, H)), _full_spec((1, 1, H)),            # ln2 gamma, beta
    ]

    return pl.pallas_call(
        kernel,
        out_shape=jax.ShapeDtypeStruct((B, T, H), jnp.float32),
        grid=(1,),                      # whole problem fits one VMEM block
        in_specs=in_specs,
        out_specs=_full_spec((B, T, H)),
        compiler_params=pltpu.CompilerParams(
            dimension_semantics=("arbitrary",),
            vmem_limit_bytes=32 * 1024 * 1024,
        ),
    )(x, vlen_g,
      bp["wq"], bp["bq"], bp["wk"], bp["bk"], bp["wv"], bp["bv"],
      bp["wo"], bp["bo"], bp["g1"], bp["beta1"],
      bp["w1"], bp["b1"], bp["w2"], bp["b2"], bp["g2"], bp["beta2"])


def bert_encoder_forward(tokens, segments, valid_lens, params, num_heads):
    # TODO(synk): embedding lookups are data-dependent gathers; kept in plain JAX.
    X = params["token_emb"][tokens] + params["seg_emb"][segments]
    X = X + params["pos_emb"][:, : tokens.shape[1], :]
    B = tokens.shape[0]
    vlen_g = jnp.repeat(valid_lens.astype(jnp.int32), num_heads).reshape(
        B * num_heads, 1, 1)
    for blk in params["blocks"]:
        bp = prep_block_params(blk, num_heads)
        X = encoder_block(X, vlen_g, bp, num_heads)
    return X


# ---------------------------------------------------------------------------
# Pure-JAX reference (mirrors d2l EncoderBlock semantics) for a sanity check.
# ---------------------------------------------------------------------------
def _encoder_block_ref(x, valid_lens, p, num_heads):
    B, T, H = x.shape
    nh, hd = num_heads, H // num_heads

    def dense(a, w, b):
        return a @ w + b

    def split(a):   # (B, T, H) -> (B, nh, T, hd)
        return a.reshape(B, T, nh, hd).transpose(0, 2, 1, 3)

    qh, kh, vh = (split(dense(x, p[w], p[b]))
                  for w, b in (("wq", "bq"), ("wk", "bk"), ("wv", "bv")))
    s = jnp.einsum('bhqd,bhkd->bhqk', qh, kh) / jnp.sqrt(float(hd))
    mask = jnp.arange(T)[None, None, None, :] < valid_lens[:, None, None, None]
    s = jnp.where(mask, s, -1e6)
    a = jax.nn.softmax(s, axis=-1)
    o = jnp.einsum('bhqk,bhkd->bhqd', a, vh).transpose(0, 2, 1, 3).reshape(B, T, H)
    attn_out = dense(o, p["wo"], p["bo"])

    def layernorm(u, g, b):
        mu = u.mean(-1, keepdims=True)
        var = ((u - mu) ** 2).mean(-1, keepdims=True)
        return (u - mu) / jnp.sqrt(var + 1e-5) * g + b

    y = layernorm(x + attn_out, p["g1"], p["beta1"])
    h1 = jnp.maximum(dense(y, p["w1"], p["b1"]), 0.0)
    return layernorm(y + dense(h1, p["w2"], p["b2"]), p["g2"], p["beta2"])


def bert_encoder_ref(tokens, segments, valid_lens, params, num_heads):
    X = params["token_emb"][tokens] + params["seg_emb"][segments]
    X = X + params["pos_emb"][:, : tokens.shape[1], :]
    for blk in params["blocks"]:
        X = _encoder_block_ref(X, valid_lens, blk, num_heads)
    return X


if __name__ == "__main__":
    vocab_size = 100
    num_hiddens = 32
    ffn_num_hiddens = 64
    num_heads = 4
    num_layers = 2
    max_len = 1000
    B, T = 2, 8

    key = jax.random.PRNGKey(0)
    keys = jax.random.split(key, 4 + num_layers)

    def init_linear(k, din, dout):
        kw, kb = jax.random.split(k)
        bound = 1.0 / jnp.sqrt(din)
        w = jax.random.uniform(kw, (din, dout), jnp.float32, -bound, bound)
        b = jax.random.uniform(kb, (1, dout), jnp.float32, -bound, bound)
        return w, b

    params = {
        "token_emb": jax.random.normal(keys[0], (vocab_size, num_hiddens), jnp.float32),
        "seg_emb": jax.random.normal(keys[1], (2, num_hiddens), jnp.float32),
        "pos_emb": jax.random.normal(keys[2], (1, max_len, num_hiddens), jnp.float32),
        "blocks": [],
    }
    for i in range(num_layers):
        bk = jax.random.split(keys[3 + i], 6)
        wq, bq = init_linear(bk[0], num_hiddens, num_hiddens)
        wk, bkk = init_linear(bk[1], num_hiddens, num_hiddens)
        wv, bv = init_linear(bk[2], num_hiddens, num_hiddens)
        wo, bo = init_linear(bk[3], num_hiddens, num_hiddens)
        w1, b1 = init_linear(bk[4], num_hiddens, ffn_num_hiddens)
        w2, b2 = init_linear(bk[5], ffn_num_hiddens, num_hiddens)
        params["blocks"].append(dict(
            wq=wq, bq=bq, wk=wk, bk=bkk, wv=wv, bv=bv, wo=wo, bo=bo,
            g1=jnp.ones((1, num_hiddens), jnp.float32),
            beta1=jnp.zeros((1, num_hiddens), jnp.float32),
            w1=w1, b1=b1, w2=w2, b2=b2,
            g2=jnp.ones((1, num_hiddens), jnp.float32),
            beta2=jnp.zeros((1, num_hiddens), jnp.float32),
        ))

    tokens = jax.random.randint(jax.random.PRNGKey(1), (B, T), 0, vocab_size, dtype=jnp.int32)
    segments = jnp.array([[0, 0, 0, 0, 1, 1, 1, 1],
                          [0, 0, 0, 1, 1, 1, 1, 1]], dtype=jnp.int32)
    valid_lens = jnp.array([8, 6], dtype=jnp.int32)

    out = bert_encoder_forward(tokens, segments, valid_lens, params, num_heads)
    jax.block_until_ready(out)
    assert out.shape == (B, T, num_hiddens)

    ref = bert_encoder_ref(tokens, segments, valid_lens, params, num_heads)
    err = float(jnp.max(jnp.abs(out - ref)))
    assert err < 1e-1, f"kernel mismatch vs reference: max abs err {err}"
    print("KERNEL_OK")
</pallas_src>

<mosaic_0001>
module attributes {stable_mosaic.version = 11 : i64} {
  func.func @encoder_block_kernel(%arg0: i32, %arg1: memref<2x8x32xf32, #tpu.memory_space<vmem>>, %arg2: memref<8x1x1xi32, #tpu.memory_space<vmem>>, %arg3: memref<4x32x8xbf16, #tpu.memory_space<vmem>>, %arg4: memref<4x1x8xf32, #tpu.memory_space<vmem>>, %arg5: memref<4x32x8xbf16, #tpu.memory_space<vmem>>, %arg6: memref<4x1x8xf32, #tpu.memory_space<vmem>>, %arg7: memref<4x32x8xbf16, #tpu.memory_space<vmem>>, %arg8: memref<4x1x8xf32, #tpu.memory_space<vmem>>, %arg9: memref<4x8x32xbf16, #tpu.memory_space<vmem>>, %arg10: memref<1x1x32xf32, #tpu.memory_space<vmem>>, %arg11: memref<1x1x32xf32, #tpu.memory_space<vmem>>, %arg12: memref<1x1x32xf32, #tpu.memory_space<vmem>>, %arg13: memref<32x64xbf16, #tpu.memory_space<vmem>>, %arg14: memref<1x64xf32, #tpu.memory_space<vmem>>, %arg15: memref<64x32xbf16, #tpu.memory_space<vmem>>, %arg16: memref<1x32xf32, #tpu.memory_space<vmem>>, %arg17: memref<1x1x32xf32, #tpu.memory_space<vmem>>, %arg18: memref<1x1x32xf32, #tpu.memory_space<vmem>>, %arg19: memref<2x8x32xf32, #tpu.memory_space<vmem>>) attributes {dimension_semantics = [#tpu.dimension_semantics<arbitrary>], iteration_bounds = array<i64: 1>, scalar_prefetch = 0 : i64, scratch_operands = 0 : i64, tpu.core_type = #tpu.core_type<tc>, window_params = [{pipeline_mode = #tpu.pipeline_mode<synchronous>, transform_indices = @transform_0, window_bounds = array<i64: 2, 8, 32>}, {pipeline_mode = #tpu.pipeline_mode<synchronous>, transform_indices = @transform_1, window_bounds = array<i64: 8, 1, 1>}, {pipeline_mode = #tpu.pipeline_mode<synchronous>, transform_indices = @transform_2, window_bounds = array<i64: 4, 32, 8>}, {pipeline_mode = #tpu.pipeline_mode<synchronous>, transform_indices = @transform_3, window_bounds = array<i64: 4, 1, 8>}, {pipeline_mode = #tpu.pipeline_mode<synchronous>, transform_indices = @transform_4, window_bounds = array<i64: 4, 32, 8>}, {pipeline_mode = #tpu.pipeline_mode<synchronous>, transform_indices = @transform_5, window_bounds = array<i64: 4, 1, 8>}, {pipeline_mode = #tpu.pipeline_mode<synchronous>, transform_indices = @transform_6, window_bounds = array<i64: 4, 32, 8>}, {pipeline_mode = #tpu.pipeline_mode<synchronous>, transform_indices = @transform_7, window_bounds = array<i64: 4, 1, 8>}, {pipeline_mode = #tpu.pipeline_mode<synchronous>, transform_indices = @transform_8, window_bounds = array<i64: 4, 8, 32>}, {pipeline_mode = #tpu.pipeline_mode<synchronous>, transform_indices = @transform_9, window_bounds = array<i64: 1, 1, 32>}, {pipeline_mode = #tpu.pipeline_mode<synchronous>, transform_indices = @transform_10, window_bounds = array<i64: 1, 1, 32>}, {pipeline_mode = #tpu.pipeline_mode<synchronous>, transform_indices = @transform_11, window_bounds = array<i64: 1, 1, 32>}, {pipeline_mode = #tpu.pipeline_mode<synchronous>, transform_indices = @transform_12, window_bounds = array<i64: 32, 64>}, {pipeline_mode = #tpu.pipeline_mode<synchronous>, transform_indices = @transform_13, window_bounds = array<i64: 1, 64>}, {pipeline_mode = #tpu.pipeline_mode<synchronous>, transform_indices = @transform_14, window_bounds = array<i64: 64, 32>}, {pipeline_mode = #tpu.pipeline_mode<synchronous>, transform_indices = @transform_15, window_bounds = array<i64: 1, 32>}, {pipeline_mode = #tpu.pipeline_mode<synchronous>, transform_indices = @transform_16, window_bounds = array<i64: 1, 1, 32>}, {pipeline_mode = #tpu.pipeline_mode<synchronous>, transform_indices = @transform_17, window_bounds = array<i64: 1, 1, 32>}, {pipeline_mode = #tpu.pipeline_mode<synchronous>, transform_indices = @transform_18, window_bounds = array<i64: 2, 8, 32>}]} {
    %c0 = arith.constant 0 : index
    %c0_0 = arith.constant 0 : index
    %c0_1 = arith.constant 0 : index
    %0 = vector.load %arg1[%c0, %c0_0, %c0_1] : memref<2x8x32xf32, #tpu.memory_space<vmem>>, vector<2x8x32xf32>
    %1 = arith.truncf %0 : vector<2x8x32xf32> to vector<2x8x32xbf16>
    %2 = vector.shape_cast %1 : vector<2x8x32xbf16> to vector<2x1x8x32xbf16>
    %3 = vector.shape_cast %2 : vector<2x1x8x32xbf16> to vector<2x1x8x32xbf16>
    %4 = vector.broadcast %3 : vector<2x1x8x32xbf16> to vector<2x4x8x32xbf16>
    %5 = vector.shape_cast %4 : vector<2x4x8x32xbf16> to vector<8x8x32xbf16>
    %c0_2 = arith.constant 0 : index
    %c0_3 = arith.constant 0 : index
    %c0_4 = arith.constant 0 : index
    %6 = vector.load %arg3[%c0_2, %c0_3, %c0_4] : memref<4x32x8xbf16, #tpu.memory_space<vmem>>, vector<4x32x8xbf16>
    %7 = vector.shape_cast %6 : vector<4x32x8xbf16> to vector<1x4x32x8xbf16>
    %8 = vector.shape_cast %7 : vector<1x4x32x8xbf16> to vector<1x4x32x8xbf16>
    %9 = vector.broadcast %8 : vector<1x4x32x8xbf16> to vector<2x4x32x8xbf16>
    %10 = vector.shape_cast %9 : vector<2x4x32x8xbf16> to vector<8x32x8xbf16>
    "tpu.trace_start"() <{level = 10 : i32, message = "gtk,gkd->gtd"}> : () -> ()
    %cst = arith.constant dense<0.000000e+00> : vector<8x8x8xf32>
    %11 = tpu.matmul %5, %10, %cst {dimension_numbers = #tpu.dot_dimension_numbers<[2], [1], [1], [2], [0, 0, 0, 1, 1, 2], [0], [0]>} : vector<8x8x32xbf16>, vector<8x32x8xbf16>, vector<8x8x8xf32> -> vector<8x8x8xf32>
    "tpu.trace_stop"() : () -> ()
    %c0_5 = arith.constant 0 : index
    %c0_6 = arith.constant 0 : index
    %c0_7 = arith.constant 0 : index
    %12 = vector.load %arg4[%c0_5, %c0_6, %c0_7] : memref<4x1x8xf32, #tpu.memory_space<vmem>>, vector<4x1x8xf32>
    %13 = vector.shape_cast %12 : vector<4x1x8xf32> to vector<1x4x1x8xf32>
    %14 = vector.shape_cast %13 : vector<1x4x1x8xf32> to vector<1x4x1x8xf32>
    %15 = vector.broadcast %14 : vector<1x4x1x8xf32> to vector<2x4x1x8xf32>
    %16 = vector.shape_cast %15 : vector<2x4x1x8xf32> to vector<8x1x8xf32>
    %17 = vector.broadcast %16 : vector<8x1x8xf32> to vector<8x8x8xf32>
    %18 = arith.addf %11, %17 : vector<8x8x8xf32>
    %c0_8 = arith.constant 0 : index
    %c0_9 = arith.constant 0 : index
    %c0_10 = arith.constant 0 : index
    %19 = vector.load %arg5[%c0_8, %c0_9, %c0_10] : memref<4x32x8xbf16, #tpu.memory_space<vmem>>, vector<4x32x8xbf16>
    %20 = vector.shape_cast %19 : vector<4x32x8xbf16> to vector<1x4x32x8xbf16>
    %21 = vector.shape_cast %20 : vector<1x4x32x8xbf16> to vector<1x4x32x8xbf16>
    %22 = vector.broadcast %21 : vector<1x4x32x8xbf16> to vector<2x4x32x8xbf16>
    %23 = vector.shape_cast %22 : vector<2x4x32x8xbf16> to vector<8x32x8xbf16>
    "tpu.trace_start"() <{level = 10 : i32, message = "gtk,gkd->gtd"}> : () -> ()
    %cst_11 = arith.constant dense<0.000000e+00> : vector<8x8x8xf32>
    %24 = tpu.matmul %5, %23, %cst_11 {dimension_numbers = #tpu.dot_dimension_numbers<[2], [1], [1], [2], [0, 0, 0, 1, 1, 2], [0], [0]>} : vector<8x8x32xbf16>, vector<8x32x8xbf16>, vector<8x8x8xf32> -> vector<8x8x8xf32>
    "tpu.trace_stop"() : () -> ()
    %c0_12 = arith.constant 0 : index
    %c0_13 = arith.constant 0 : index
    %c0_14 = arith.constant 0 : index
    %25 = vector.load %arg6[%c0_12, %c0_13, %c0_14] : memref<4x1x8xf32, #tpu.memory_space<vmem>>, vector<4x1x8xf32>
    %26 = vector.shape_cast %25 : vector<4x1x8xf32> to vector<1x4x1x8xf32>
    %27 = vector.shape_cast %26 : vector<1x4x1x8xf32> to vector<1x4x1x8xf32>
    %28 = vector.broadcast %27 : vector<1x4x1x8xf32> to vector<2x4x1x8xf32>
    %29 = vector.shape_cast %28 : vector<2x4x1x8xf32> to vector<8x1x8xf32>
    %30 = vector.broadcast %29 : vector<8x1x8xf32> to vector<8x8x8xf32>
    %31 = arith.addf %24, %30 : vector<8x8x8xf32>
    %c0_15 = arith.constant 0 : index
    %c0_16 = arith.constant 0 : index
    %c0_17 = arith.constant 0 : index
    %32 = vector.load %arg7[%c0_15, %c0_16, %c0_17] : memref<4x32x8xbf16, #tpu.memory_space<vmem>>, vector<4x32x8xbf16>
    %33 = vector.shape_cast %32 : vector<4x32x8xbf16> to vector<1x4x32x8xbf16>
    %34 = vector.shape_cast %33 : vector<1x4x32x8xbf16> to vector<1x4x32x8xbf16>
    %35 = vector.broadcast %34 : vector<1x4x32x8xbf16> to vector<2x4x32x8xbf16>
    %36 = vector.shape_cast %35 : vector<2x4x32x8xbf16> to vector<8x32x8xbf16>
    "tpu.trace_start"() <{level = 10 : i32, message = "gtk,gkd->gtd"}> : () -> ()
    %cst_18 = arith.constant dense<0.000000e+00> : vector<8x8x8xf32>
    %37 = tpu.matmul %5, %36, %cst_18 {dimension_numbers = #tpu.dot_dimension_numbers<[2], [1], [1], [2], [0, 0, 0, 1, 1, 2], [0], [0]>} : vector<8x8x32xbf16>, vector<8x32x8xbf16>, vector<8x8x8xf32> -> vector<8x8x8xf32>
    "tpu.trace_stop"() : () -> ()
    %c0_19 = arith.constant 0 : index
    %c0_20 = arith.constant 0 : index
    %c0_21 = arith.constant 0 : index
    %38 = vector.load %arg8[%c0_19, %c0_20, %c0_21] : memref<4x1x8xf32, #tpu.memory_space<vmem>>, vector<4x1x8xf32>
    %39 = vector.shape_cast %38 : vector<4x1x8xf32> to vector<1x4x1x8xf32>
    %40 = vector.shape_cast %39 : vector<1x4x1x8xf32> to vector<1x4x1x8xf32>
    %41 = vector.broadcast %40 : vector<1x4x1x8xf32> to vector<2x4x1x8xf32>
    %42 = vector.shape_cast %41 : vector<2x4x1x8xf32> to vector<8x1x8xf32>
    %43 = vector.broadcast %42 : vector<8x1x8xf32> to vector<8x8x8xf32>
    %44 = arith.addf %37, %43 : vector<8x8x8xf32>
    %45 = arith.truncf %18 : vector<8x8x8xf32> to vector<8x8x8xbf16>
    %46 = arith.truncf %31 : vector<8x8x8xf32> to vector<8x8x8xbf16>
    "tpu.trace_start"() <{level = 10 : i32, message = "gqd,gkd->gqk"}> : () -> ()
    %cst_22 = arith.constant dense<0.000000e+00> : vector<8x8x8xf32>
    %47 = tpu.matmul %45, %46, %cst_22 {dimension_numbers = #tpu.dot_dimension_numbers<[2], [2], [1], [1], [0, 0, 0, 1, 1, 1], [0], [0]>} : vector<8x8x8xbf16>, vector<8x8x8xbf16>, vector<8x8x8xf32> -> vector<8x8x8xf32>
    "tpu.trace_stop"() : () -> ()
    %cst_23 = arith.constant 0.353553385 : f32
    %48 = vector.broadcast %cst_23 : f32 to vector<8x8x8xf32>
    %49 = arith.mulf %47, %48 : vector<8x8x8xf32>
    %50 = tpu.iota {dimensions = array<i32: 2>} : vector<8x8x8xi32>
    %c0_24 = arith.constant 0 : index
    %c0_25 = arith.constant 0 : index
    %c0_26 = arith.constant 0 : index
    %51 = vector.load %arg2[%c0_24, %c0_25, %c0_26] : memref<8x1x1xi32, #tpu.memory_space<vmem>>, vector<8x1x1xi32>
    %52 = vector.broadcast %51 : vector<8x1x1xi32> to vector<8x8x8xi32>
    %53 = arith.cmpi slt, %50, %52 : vector<8x8x8xi32>
    %cst_27 = arith.constant -1.000000e+06 : f32
    %54 = vector.broadcast %cst_27 : f32 to vector<8x8x8xf32>
    %55 = arith.select %53, %49, %54 : vector<8x8x8xi1>, vector<8x8x8xf32>
    %cst_28 = arith.constant dense<0xFF800000> : vector<8x8xf32>
    %56 = vector.multi_reduction <maximumf>, %55, %cst_28 [2] : vector<8x8x8xf32> to vector<8x8xf32>
    %57 = vector.shape_cast %56 : vector<8x8xf32> to vector<8x8x1xf32>
    %58 = vector.broadcast %57 : vector<8x8x1xf32> to vector<8x8x8xf32>
    %59 = arith.subf %55, %58 : vector<8x8x8xf32>
    %60 = math.exp %59 : vector<8x8x8xf32>
    %cst_29 = arith.constant dense<0.000000e+00> : vector<8x8xf32>
    %61 = vector.multi_reduction <add>, %60, %cst_29 [2] : vector<8x8x8xf32> to vector<8x8xf32>
    %62 = vector.shape_cast %61 : vector<8x8xf32> to vector<8x8x1xf32>
    %63 = tpu.reciprocal %62 {approx = true} : vector<8x8x1xf32> -> vector<8x8x1xf32>
    %64 = vector.broadcast %63 : vector<8x8x1xf32> to vector<8x8x8xf32>
    %65 = arith.mulf %60, %64 : vector<8x8x8xf32>
    %66 = arith.truncf %65 : vector<8x8x8xf32> to vector<8x8x8xbf16>
    %67 = arith.truncf %44 : vector<8x8x8xf32> to vector<8x8x8xbf16>
    "tpu.trace_start"() <{level = 10 : i32, message = "gqk,gkd->gqd"}> : () -> ()
    %cst_30 = arith.constant dense<0.000000e+00> : vector<8x8x8xf32>
    %68 = tpu.matmul %66, %67, %cst_30 {dimension_numbers = #tpu.dot_dimension_numbers<[2], [1], [1], [2], [0, 0, 0, 1, 1, 2], [0], [0]>} : vector<8x8x8xbf16>, vector<8x8x8xbf16>, vector<8x8x8xf32> -> vector<8x8x8xf32>
    "tpu.trace_stop"() : () -> ()
    %69 = arith.truncf %68 : vector<8x8x8xf32> to vector<8x8x8xbf16>
    %c0_31 = arith.constant 0 : index
    %c0_32 = arith.constant 0 : index
    %c0_33 = arith.constant 0 : index
    %70 = vector.load %arg9[%c0_31, %c0_32, %c0_33] : memref<4x8x32xbf16, #tpu.memory_space<vmem>>, vector<4x8x32xbf16>
    %71 = vector.shape_cast %70 : vector<4x8x32xbf16> to vector<1x4x8x32xbf16>
    %72 = vector.shape_cast %71 : vector<1x4x8x32xbf16> to vector<1x4x8x32xbf16>
    %73 = vector.broadcast %72 : vector<1x4x8x32xbf16> to vector<2x4x8x32xbf16>
    %74 = vector.shape_cast %73 : vector<2x4x8x32xbf16> to vector<8x8x32xbf16>
    "tpu.trace_start"() <{level = 10 : i32, message = "gtd,gdo->gto"}> : () -> ()
    %cst_34 = arith.constant dense<0.000000e+00> : vector<8x8x32xf32>
    %75 = tpu.matmul %69, %74, %cst_34 {dimension_numbers = #tpu.dot_dimension_numbers<[2], [1], [1], [2], [0, 0, 0, 1, 1, 2], [0], [0]>} : vector<8x8x8xbf16>, vector<8x8x32xbf16>, vector<8x8x32xf32> -> vector<8x8x32xf32>
    "tpu.trace_stop"() : () -> ()
    %76 = vector.shape_cast %75 : vector<8x8x32xf32> to vector<2x4x8x32xf32>
    %cst_35 = arith.constant dense<0.000000e+00> : vector<2x8x32xf32>
    %77 = vector.multi_reduction <add>, %76, %cst_35 [1] : vector<2x4x8x32xf32> to vector<2x8x32xf32>
    %c0_36 = arith.constant 0 : index
    %c0_37 = arith.constant 0 : index
    %c0_38 = arith.constant 0 : index
    %78 = vector.load %arg10[%c0_36, %c0_37, %c0_38] : memref<1x1x32xf32, #tpu.memory_space<vmem>>, vector<1x1x32xf32>
    %79 = vector.broadcast %78 : vector<1x1x32xf32> to vector<2x8x32xf32>
    %80 = arith.addf %77, %79 : vector<2x8x32xf32>
    %81 = arith.addf %0, %80 : vector<2x8x32xf32>
    %cst_39 = arith.constant dense<0.000000e+00> : vector<2x8xf32>
    %82 = vector.multi_reduction <add>, %81, %cst_39 [2] : vector<2x8x32xf32> to vector<2x8xf32>
    %83 = vector.shape_cast %82 : vector<2x8xf32> to vector<2x8x1xf32>
    %cst_40 = arith.constant 3.200000e+01 : f32
    %84 = vector.broadcast %cst_40 : f32 to vector<2x8x1xf32>
    %85 = arith.divf %83, %84 : vector<2x8x1xf32>
    %86 = vector.broadcast %85 : vector<2x8x1xf32> to vector<2x8x32xf32>
    %87 = arith.subf %81, %86 : vector<2x8x32xf32>
    %88 = arith.mulf %87, %87 : vector<2x8x32xf32>
    %cst_41 = arith.constant dense<0.000000e+00> : vector<2x8xf32>
    %89 = vector.multi_reduction <add>, %88, %cst_41 [2] : vector<2x8x32xf32> to vector<2x8xf32>
    %90 = vector.shape_cast %89 : vector<2x8xf32> to vector<2x8x1xf32>
    %cst_42 = arith.constant 3.200000e+01 : f32
    %91 = vector.broadcast %cst_42 : f32 to vector<2x8x1xf32>
    %92 = arith.divf %90, %91 : vector<2x8x1xf32>
    %93 = vector.broadcast %85 : vector<2x8x1xf32> to vector<2x8x32xf32>
    %94 = arith.subf %81, %93 : vector<2x8x32xf32>
    %cst_43 = arith.constant 9.99999974E-6 : f32
    %95 = vector.broadcast %cst_43 : f32 to vector<2x8x1xf32>
    %96 = arith.addf %92, %95 : vector<2x8x1xf32>
    %97 = math.rsqrt %96 : vector<2x8x1xf32>
    %98 = vector.broadcast %97 : vector<2x8x1xf32> to vector<2x8x32xf32>
    %99 = arith.mulf %94, %98 : vector<2x8x32xf32>
    %c0_44 = arith.constant 0 : index
    %c0_45 = arith.constant 0 : index
    %c0_46 = arith.constant 0 : index
    %100 = vector.load %arg11[%c0_44, %c0_45, %c0_46] : memref<1x1x32xf32, #tpu.memory_space<vmem>>, vector<1x1x32xf32>
    %101 = vector.broadcast %100 : vector<1x1x32xf32> to vector<2x8x32xf32>
    %102 = arith.mulf %99, %101 : vector<2x8x32xf32>
    %c0_47 = arith.constant 0 : index
    %c0_48 = arith.constant 0 : index
    %c0_49 = arith.constant 0 : index
    %103 = vector.load %arg12[%c0_47, %c0_48, %c0_49] : memref<1x1x32xf32, #tpu.memory_space<vmem>>, vector<1x1x32xf32>
    %104 = vector.broadcast %103 : vector<1x1x32xf32> to vector<2x8x32xf32>
    %105 = arith.addf %102, %104 : vector<2x8x32xf32>
    %106 = vector.shape_cast %105 : vector<2x8x32xf32> to vector<16x32xf32>
    %107 = arith.truncf %106 : vector<16x32xf32> to vector<16x32xbf16>
    %c0_50 = arith.constant 0 : index
    %c0_51 = arith.constant 0 : index
    %108 = vector.load %arg13[%c0_50, %c0_51] : memref<32x64xbf16, #tpu.memory_space<vmem>>, vector<32x64xbf16>
    %cst_52 = arith.constant dense<0.000000e+00> : vector<16x64xf32>
    %109 = tpu.matmul %107, %108, %cst_52 {dimension_numbers = #tpu.dot_dimension_numbers<[1], [0], [0], [1], [0, 0, 1, 1], [], []>} : vector<16x32xbf16>, vector<32x64xbf16>, vector<16x64xf32> -> vector<16x64xf32>
    %c0_53 = arith.constant 0 : index
    %c0_54 = arith.constant 0 : index
    %110 = vector.load %arg14[%c0_53, %c0_54] : memref<1x64xf32, #tpu.memory_space<vmem>>, vector<1x64xf32>
    %111 = vector.broadcast %110 : vector<1x64xf32> to vector<16x64xf32>
    %112 = arith.addf %109, %111 : vector<16x64xf32>
    %cst_55 = arith.constant 0.000000e+00 : f32
    %113 = vector.broadcast %cst_55 : f32 to vector<16x64xf32>
    %114 = arith.maximumf %112, %113 : vector<16x64xf32>
    %115 = arith.truncf %114 : vector<16x64xf32> to vector<16x64xbf16>
    %c0_56 = arith.constant 0 : index
    %c0_57 = arith.constant 0 : index
    %116 = vector.load %arg15[%c0_56, %c0_57] : memref<64x32xbf16, #tpu.memory_space<vmem>>, vector<64x32xbf16>
    %cst_58 = arith.constant dense<0.000000e+00> : vector<16x32xf32>
    %117 = tpu.matmul %115, %116, %cst_58 {dimension_numbers = #tpu.dot_dimension_numbers<[1], [0], [0], [1], [0, 0, 1, 1], [], []>} : vector<16x64xbf16>, vector<64x32xbf16>, vector<16x32xf32> -> vector<16x32xf32>
    %c0_59 = arith.constant 0 : index
    %c0_60 = arith.constant 0 : index
    %118 = vector.load %arg16[%c0_59, %c0_60] : memref<1x32xf32, #tpu.memory_space<vmem>>, vector<1x32xf32>
    %119 = vector.broadcast %118 : vector<1x32xf32> to vector<16x32xf32>
    %120 = arith.addf %117, %119 : vector<16x32xf32>
    %121 = vector.shape_cast %120 : vector<16x32xf32> to vector<2x8x32xf32>
    %122 = arith.addf %105, %121 : vector<2x8x32xf32>
    %cst_61 = arith.constant dense<0.000000e+00> : vector<2x8xf32>
    %123 = vector.multi_reduction <add>, %122, %cst_61 [2] : vector<2x8x32xf32> to vector<2x8xf32>
    %124 = vector.shape_cast %123 : vector<2x8xf32> to vector<2x8x1xf32>
    %cst_62 = arith.constant 3.200000e+01 : f32
    %125 = vector.broadcast %cst_62 : f32 to vector<2x8x1xf32>
    %126 = arith.divf %124, %125 : vector<2x8x1xf32>
    %127 = vector.broadcast %126 : vector<2x8x1xf32> to vector<2x8x32xf32>
    %128 = arith.subf %122, %127 : vector<2x8x32xf32>
    %129 = arith.mulf %128, %128 : vector<2x8x32xf32>
    %cst_63 = arith.constant dense<0.000000e+00> : vector<2x8xf32>
    %130 = vector.multi_reduction <add>, %129, %cst_63 [2] : vector<2x8x32xf32> to vector<2x8xf32>
    %131 = vector.shape_cast %130 : vector<2x8xf32> to vector<2x8x1xf32>
    %cst_64 = arith.constant 3.200000e+01 : f32
    %132 = vector.broadcast %cst_64 : f32 to vector<2x8x1xf32>
    %133 = arith.divf %131, %132 : vector<2x8x1xf32>
    %134 = vector.broadcast %126 : vector<2x8x1xf32> to vector<2x8x32xf32>
    %135 = arith.subf %122, %134 : vector<2x8x32xf32>
    %cst_65 = arith.constant 9.99999974E-6 : f32
    %136 = vector.broadcast %cst_65 : f32 to vector<2x8x1xf32>
    %137 = arith.addf %133, %136 : vector<2x8x1xf32>
    %138 = math.rsqrt %137 : vector<2x8x1xf32>
    %139 = vector.broadcast %138 : vector<2x8x1xf32> to vector<2x8x32xf32>
    %140 = arith.mulf %135, %139 : vector<2x8x32xf32>
    %c0_66 = arith.constant 0 : index
    %c0_67 = arith.constant 0 : index
    %c0_68 = arith.constant 0 : index
    %141 = vector.load %arg17[%c0_66, %c0_67, %c0_68] : memref<1x1x32xf32, #tpu.memory_space<vmem>>, vector<1x1x32xf32>
    %142 = vector.broadcast %141 : vector<1x1x32xf32> to vector<2x8x32xf32>
    %143 = arith.mulf %140, %142 : vector<2x8x32xf32>
    %c0_69 = arith.constant 0 : index
    %c0_70 = arith.constant 0 : index
    %c0_71 = arith.constant 0 : index
    %144 = vector.load %arg18[%c0_69, %c0_70, %c0_71] : memref<1x1x32xf32, #tpu.memory_space<vmem>>, vector<1x1x32xf32>
    %145 = vector.broadcast %144 : vector<1x1x32xf32> to vector<2x8x32xf32>
    %146 = arith.addf %143, %145 : vector<2x8x32xf32>
    %c0_72 = arith.constant 0 : index
    %c0_73 = arith.constant 0 : index
    %c0_74 = arith.constant 0 : index
    %147 = vector.load %arg19[%c0_72, %c0_73, %c0_74] : memref<2x8x32xf32, #tpu.memory_space<vmem>>, vector<2x8x32xf32>
    tpu.vector_store %arg19[%c0_72, %c0_73, %c0_74], %146 {strides = array<i32>} : memref<2x8x32xf32, #tpu.memory_space<vmem>>, vector<2x8x32xf32>,
    return
  }
  func.func @transform_0(%arg0: i32) -> (i32, i32, i32) {
    %c0_i32 = arith.constant 0 : i32
    %c0_i32_0 = arith.constant 0 : i32
    %c0_i32_1 = arith.constant 0 : i32
    %c0_i32_2 = arith.constant 0 : i32
    return %c0_i32, %c0_i32_0, %c0_i32_1 : i32, i32, i32
  }
  func.func @transform_1(%arg0: i32) -> (i32, i32, i32) {
    %c0_i32 = arith.constant 0 : i32
    %c0_i32_0 = arith.constant 0 : i32
    %c0_i32_1 = arith.constant 0 : i32
    %c0_i32_2 = arith.constant 0 : i32
    return %c0_i32, %c0_i32_0, %c0_i32_1 : i32, i32, i32
  }
  func.func @transform_2(%arg0: i32) -> (i32, i32, i32) {
    %c0_i32 = arith.constant 0 : i32
    %c0_i32_0 = arith.constant 0 : i32
    %c0_i32_1 = arith.constant 0 : i32
    %c0_i32_2 = arith.constant 0 : i32
    return %c0_i32, %c0_i32_0, %c0_i32_1 : i32, i32, i32
  }
  func.func @transform_3(%arg0: i32) -> (i32, i32, i32) {
    %c0_i32 = arith.constant 0 : i32
    %c0_i32_0 = arith.constant 0 : i32
    %c0_i32_1 = arith.constant 0 : i32
    %c0_i32_2 = arith.constant 0 : i32
    return %c0_i32, %c0_i32_0, %c0_i32_1 : i32, i32, i32
  }
  func.func @transform_4(%arg0: i32) -> (i32, i32, i32) {
    %c0_i32 = arith.constant 0 : i32
    %c0_i32_0 = arith.constant 0 : i32
    %c0_i32_1 = arith.constant 0 : i32
    %c0_i32_2 = arith.constant 0 : i32
    return %c0_i32, %c0_i32_0, %c0_i32_1 : i32, i32, i32
  }
  func.func @transform_5(%arg0: i32) -> (i32, i32, i32) {
    %c0_i32 = arith.constant 0 : i32
    %c0_i32_0 = arith.constant 0 : i32
    %c0_i32_1 = arith.constant 0 : i32
    %c0_i32_2 = arith.constant 0 : i32
    return %c0_i32, %c0_i32_0, %c0_i32_1 : i32, i32, i32
  }
  func.func @transform_6(%arg0: i32) -> (i32, i32, i32) {
    %c0_i32 = arith.constant 0 : i32
    %c0_i32_0 = arith.constant 0 : i32
    %c0_i32_1 = arith.constant 0 : i32
    %c0_i32_2 = arith.constant 0 : i32
    return %c0_i32, %c0_i32_0, %c0_i32_1 : i32, i32, i32
  }
  func.func @transform_7(%arg0: i32) -> (i32, i32, i32) {
    %c0_i32 = arith.constant 0 : i32
    %c0_i32_0 = arith.constant 0 : i32
    %c0_i32_1 = arith.constant 0 : i32
    %c0_i32_2 = arith.constant 0 : i32
    return %c0_i32, %c0_i32_0, %c0_i32_1 : i32, i32, i32
  }
  func.func @transform_8(%arg0: i32) -> (i32, i32, i32) {
    %c0_i32 = arith.constant 0 : i32
    %c0_i32_0 = arith.constant 0 : i32
    %c0_i32_1 = arith.constant 0 : i32
    %c0_i32_2 = arith.constant 0 : i32
    return %c0_i32, %c0_i32_0, %c0_i32_1 : i32, i32, i32
  }
  func.func @transform_9(%arg0: i32) -> (i32, i32, i32) {
    %c0_i32 = arith.constant 0 : i32
    %c0_i32_0 = arith.constant 0 : i32
    %c0_i32_1 = arith.constant 0 : i32
    %c0_i32_2 = arith.constant 0 : i32
    return %c0_i32, %c0_i32_0, %c0_i32_1 : i32, i32, i32
  }
  func.func @transform_10(%arg0: i32) -> (i32, i32, i32) {
    %c0_i32 = arith.constant 0 : i32
    %c0_i32_0 = arith.constant 0 : i32
    %c0_i32_1 = arith.constant 0 : i32
    %c0_i32_2 = arith.constant 0 : i32
    return %c0_i32, %c0_i32_0, %c0_i32_1 : i32, i32, i32
  }
  func.func @transform_11(%arg0: i32) -> (i32, i32, i32) {
    %c0_i32 = arith.constant 0 : i32
    %c0_i32_0 = arith.constant 0 : i32
    %c0_i32_1 = arith.constant 0 : i32
    %c0_i32_2 = arith.constant 0 : i32
    return %c0_i32, %c0_i32_0, %c0_i32_1 : i32, i32, i32
  }
  func.func @transform_12(%arg0: i32) -> (i32, i32) {
    %c0_i32 = arith.constant 0 : i32
    %c0_i32_0 = arith.constant 0 : i32
    %c0_i32_1 = arith.constant 0 : i32
    return %c0_i32, %c0_i32_0 : i32, i32
  }
  func.func @transform_13(%arg0: i32) -> (i32, i32) {
    %c0_i32 = arith.constant 0 : i32
    %c0_i32_0 = arith.constant 0 : i32
    %c0_i32_1 = arith.constant 0 : i32
    return %c0_i32, %c0_i32_0 : i32, i32
  }
  func.func @transform_14(%arg0: i32) -> (i32, i32) {
    %c0_i32 = arith.constant 0 : i32
    %c0_i32_0 = arith.constant 0 : i32
    %c0_i32_1 = arith.constant 0 : i32
    return %c0_i32, %c0_i32_0 : i32, i32
  }
  func.func @transform_15(%arg0: i32) -> (i32, i32) {
    %c0_i32 = arith.constant 0 : i32
    %c0_i32_0 = arith.constant 0 : i32
    %c0_i32_1 = arith.constant 0 : i32
    return %c0_i32, %c0_i32_0 : i32, i32
  }
  func.func @transform_16(%arg0: i32) -> (i32, i32, i32) {
    %c0_i32 = arith.constant 0 : i32
    %c0_i32_0 = arith.constant 0 : i32
    %c0_i32_1 = arith.constant 0 : i32
    %c0_i32_2 = arith.constant 0 : i32
    return %c0_i32, %c0_i32_0, %c0_i32_1 : i32, i32, i32
  }
  func.func @transform_17(%arg0: i32) -> (i32, i32, i32) {
    %c0_i32 = arith.constant 0 : i32
    %c0_i32_0 = arith.constant 0 : i32
    %c0_i32_1 = arith.constant 0 : i32
    %c0_i32_2 = arith.constant 0 : i32
    return %c0_i32, %c0_i32_0, %c0_i32_1 : i32, i32, i32
  }
  func.func @transform_18(%arg0: i32) -> (i32, i32, i32) {
    %c0_i32 = arith.constant 0 : i32
    %c0_i32_0 = arith.constant 0 : i32
    %c0_i32_1 = arith.constant 0 : i32
    %c0_i32_2 = arith.constant 0 : i32
    return %c0_i32, %c0_i32_0, %c0_i32_1 : i32, i32, i32
  }
}

</mosaic_0001>

<llo_original>
// kernel: tpu_custom_call.1
$region0: #{tpu_custom_call.1}
  #allocation0 [shape = 'u32[]', space=smem, size = 0x4, offset = 0x4, fixed_abs, tag = 'smem constant byte address 0x4 - core index']
  #allocation1 [shape = 'u32[72,128]{1,0:T(1,128)}', space=vmem, size = 0x9000, scoped, tag = 'internal scratch']
  %s0 = inlined_call_operand.vmem [shape: f32[2,8,32], index: 0, kind: input, shape index: {}]
  %s1 = inlined_call_operand.vmem [shape: s32[8,1,1], index: 1, kind: input, shape index: {}]
  %s2 = inlined_call_operand.vmem [shape: bf16[4,32,8], index: 2, kind: input, shape index: {}]
  %s3 = inlined_call_operand.vmem [shape: f32[4,1,8], index: 3, kind: input, shape index: {}]
  %s4 = inlined_call_operand.vmem [shape: bf16[4,32,8], index: 4, kind: input, shape index: {}]
  %s5 = inlined_call_operand.vmem [shape: f32[4,1,8], index: 5, kind: input, shape index: {}]
  %s6 = inlined_call_operand.vmem [shape: bf16[4,32,8], index: 6, kind: input, shape index: {}]
  %s7 = inlined_call_operand.vmem [shape: f32[4,1,8], index: 7, kind: input, shape index: {}]
  %s8 = inlined_call_operand.vmem [shape: bf16[4,8,32], index: 8, kind: input, shape index: {}]
  %s9 = inlined_call_operand.vmem [shape: f32[1,1,32], index: 9, kind: input, shape index: {}]
  %s10 = inlined_call_operand.vmem [shape: f32[1,1,32], index: 10, kind: input, shape index: {}]
  %s11 = inlined_call_operand.vmem [shape: f32[1,1,32], index: 11, kind: input, shape index: {}]
  %s12 = inlined_call_operand.vmem [shape: bf16[32,64], index: 12, kind: input, shape index: {}]
  %s13 = inlined_call_operand.vmem [shape: f32[1,64], index: 13, kind: input, shape index: {}]
  %s14 = inlined_call_operand.vmem [shape: bf16[64,32], index: 14, kind: input, shape index: {}]
  %s15 = inlined_call_operand.vmem [shape: f32[1,32], index: 15, kind: input, shape index: {}]
  %s16 = inlined_call_operand.vmem [shape: f32[1,1,32], index: 16, kind: input, shape index: {}]
  %s17 = inlined_call_operand.vmem [shape: f32[1,1,32], index: 17, kind: input, shape index: {}]
  %s18 = inlined_call_operand.hbm [shape: f32[2,8,32], index: 18, kind: output, shape index: {}]
  %s19 = sld [smem:[#allocation0]]
  $region82: #{tpu_custom_call.1} parent=0
    _
  %s21 = ssub.s32 1, %s19
  %s22 = scalar_select 0, %s21, %s19
  $region1: #{tpu_custom_call.1} parent=0
    #allocation2 [shape = 'u8[8192]{0}', space=vmem, size = 0x2000, scoped, tag = 'output window, operand 0, single buffered']
    #allocation3 [shape = 's32[1]{0}', space=sflag, size = 0x4, scoped, tag = 'scoped memory for tpu_custom_call.1']
    %23 = vsyncpa [#allocation3], 0
    // Predicated region
    $region2: #{tpu_custom_call.1} parent=1 // pred_check
      _
    $region3: #{tpu_custom_call.1} parent=1 // pred_check_branch
      %25 = sbr.rel (0) target = $region5
    $region4: #{tpu_custom_call.1} parent=1 // pred_region
      _
    $region5: #{tpu_custom_call.1} parent=1 // pred_fallthru
      _
    // Predicated region
    $region6: #{tpu_custom_call.1} parent=1 // pred_check
      _
    $region7: #{tpu_custom_call.1} parent=1 // pred_check_branch
      %27 = sbr.rel (0) target = $region9
    $region8: #{tpu_custom_call.1} parent=1 // pred_region
      _
    $region9: #{tpu_custom_call.1} parent=1 // pred_fallthru
      _
    // Predicated region
    $region10: #{tpu_custom_call.1} parent=1 // pred_check
      _
    $region11: #{tpu_custom_call.1} parent=1 // pred_check_branch
      %29 = sbr.rel (0) target = $region13
    $region12: #{tpu_custom_call.1} parent=1 // pred_region
      _
    $region13: #{tpu_custom_call.1} parent=1 // pred_fallthru
      _
    // Predicated region
    $region14: #{tpu_custom_call.1} parent=1 // pred_check
      _
    $region15: #{tpu_custom_call.1} parent=1 // pred_check_branch
      %31 = sbr.rel (0) target = $region17
    $region16: #{tpu_custom_call.1} parent=1 // pred_region
      _
    $region17: #{tpu_custom_call.1} parent=1 // pred_fallthru
      _
    // Predicated region
    $region18: #{tpu_custom_call.1} parent=1 // pred_check
      _
    $region19: #{tpu_custom_call.1} parent=1 // pred_check_branch
      %33 = sbr.rel (0) target = $region21
    $region20: #{tpu_custom_call.1} parent=1 // pred_region
      _
    $region21: #{tpu_custom_call.1} parent=1 // pred_fallthru
      _
    // Predicated region
    $region22: #{tpu_custom_call.1} parent=1 // pred_check
      _
    $region23: #{tpu_custom_call.1} parent=1 // pred_check_branch
      %35 = sbr.rel (0) target = $region25
    $region24: #{tpu_custom_call.1} parent=1 // pred_region
      _
    $region25: #{tpu_custom_call.1} parent=1 // pred_fallthru
      _
    // Predicated region
    $region26: #{tpu_custom_call.1} parent=1 // pred_check
      _
    $region27: #{tpu_custom_call.1} parent=1 // pred_check_branch
      %37 = sbr.rel (0) target = $region29
    $region28: #{tpu_custom_call.1} parent=1 // pred_region
      _
    $region29: #{tpu_custom_call.1} parent=1 // pred_fallthru
      _
    // Predicated region
    $region30: #{tpu_custom_call.1} parent=1 // pred_check
      _
    $region31: #{tpu_custom_call.1} parent=1 // pred_check_branch
      %39 = sbr.rel (0) target = $region33
    $region32: #{tpu_custom_call.1} parent=1 // pred_region
      _
    $region33: #{tpu_custom_call.1} parent=1 // pred_fallthru
      _
    // Predicated region
    $region34: #{tpu_custom_call.1} parent=1 // pred_check
      _
    $region35: #{tpu_custom_call.1} parent=1 // pred_check_branch
      %41 = sbr.rel (0) target = $region37
    $region36: #{tpu_custom_call.1} parent=1 // pred_region
      _
    $region37: #{tpu_custom_call.1} parent=1 // pred_fallthru
      _
    // Predicated region
    $region38: #{tpu_custom_call.1} parent=1 // pred_check
      _
    $region39: #{tpu_custom_call.1} parent=1 // pred_check_branch
      %43 = sbr.rel (0) target = $region41
    $region40: #{tpu_custom_call.1} parent=1 // pred_region
      _
    $region41: #{tpu_custom_call.1} parent=1 // pred_fallthru
      _
    // Predicated region
    $region42: #{tpu_custom_call.1} parent=1 // pred_check
      _
    $region43: #{tpu_custom_call.1} parent=1 // pred_check_branch
      %45 = sbr.rel (0) target = $region45
    $region44: #{tpu_custom_call.1} parent=1 // pred_region
      _
    $region45: #{tpu_custom_call.1} parent=1 // pred_fallthru
      _
    // Predicated region
    $region46: #{tpu_custom_call.1} parent=1 // pred_check
      _
    $region47: #{tpu_custom_call.1} parent=1 // pred_check_branch
      %47 = sbr.rel (0) target = $region49
    $region48: #{tpu_custom_call.1} parent=1 // pred_region
      _
    $region49: #{tpu_custom_call.1} parent=1 // pred_fallthru
      _
    // Predicated region
    $region50: #{tpu_custom_call.1} parent=1 // pred_check
      _
    $region51: #{tpu_custom_call.1} parent=1 // pred_check_branch
      %49 = sbr.rel (0) target = $region53
    $region52: #{tpu_custom_call.1} parent=1 // pred_region
      _
    $region53: #{tpu_custom_call.1} parent=1 // pred_fallthru
      _
    // Predicated region
    $region54: #{tpu_custom_call.1} parent=1 // pred_check
      _
    $region55: #{tpu_custom_call.1} parent=1 // pred_check_branch
      %51 = sbr.rel (0) target = $region57
    $region56: #{tpu_custom_call.1} parent=1 // pred_region
      _
    $region57: #{tpu_custom_call.1} parent=1 // pred_fallthru
      _
    // Predicated region
    $region58: #{tpu_custom_call.1} parent=1 // pred_check
      _
    $region59: #{tpu_custom_call.1} parent=1 // pred_check_branch
      %53 = sbr.rel (0) target = $region61
    $region60: #{tpu_custom_call.1} parent=1 // pred_region
      _
    $region61: #{tpu_custom_call.1} parent=1 // pred_fallthru
      _
    // Predicated region
    $region62: #{tpu_custom_call.1} parent=1 // pred_check
      _
    $region63: #{tpu_custom_call.1} parent=1 // pred_check_branch
      %55 = sbr.rel (0) target = $region65
    $region64: #{tpu_custom_call.1} parent=1 // pred_region
      _
    $region65: #{tpu_custom_call.1} parent=1 // pred_fallthru
      _
    // Predicated region
    $region66: #{tpu_custom_call.1} parent=1 // pred_check
      _
    $region67: #{tpu_custom_call.1} parent=1 // pred_check_branch
      %57 = sbr.rel (0) target = $region69
    $region68: #{tpu_custom_call.1} parent=1 // pred_region
      _
    $region69: #{tpu_custom_call.1} parent=1 // pred_fallthru
      _
    // Predicated region
    $region70: #{tpu_custom_call.1} parent=1 // pred_check
      _
    $region71: #{tpu_custom_call.1} parent=1 // pred_check_branch
      %59 = sbr.rel (0) target = $region73
    $region72: #{tpu_custom_call.1} parent=1 // pred_region
      _
    $region73: #{tpu_custom_call.1} parent=1 // pred_fallthru
      _
    %v61 = vld [vmem:[%s0] sm:$0xff]
    %v62 = vld [vmem:[%s0 + $0x8] sm:$0xff]
    %v63 = vpack.c.bf16 %v61, %v61
    %v64 = vpack.c.bf16 %v62, %v62
    %v65 = vld [vmem:[%s2] sm:$0xf]
    %v66 = vld [vmem:[%s2 + $0x4] sm:$0xf]
    %v67 = vld [vmem:[%s2 + $0x8] sm:$0xf]
    %v68 = vld [vmem:[%s2 + $0xc] sm:$0xf]
    %v69 = vld [vmem:[%s2 + $0x10] sm:$0xf]
    %v70 = vld [vmem:[%s2 + $0x14] sm:$0xf]
    %v71 = vld [vmem:[%s2 + $0x18] sm:$0xf]
    %v72 = vld [vmem:[%s2 + $0x1c] sm:$0xf]
    %v73 = vld [vmem:[%s2 + $0x20] sm:$0xf]
    %v74 = vld [vmem:[%s2 + $0x24] sm:$0xf]
    %v75 = vld [vmem:[%s2 + $0x28] sm:$0xf]
    %v76 = vld [vmem:[%s2 + $0x2c] sm:$0xf]
    %v77 = vld [vmem:[%s2 + $0x30] sm:$0xf]
    %v78 = vld [vmem:[%s2 + $0x34] sm:$0xf]
    %v79 = vld [vmem:[%s2 + $0x38] sm:$0xf]
    %v80 = vld [vmem:[%s2 + $0x3c] sm:$0xf]
    %v81 = vld [vmem:[%s3] sm:$0x1]
    %v82 = vld [vmem:[%s3 + $0x1] sm:$0x1]
    %v83 = vld [vmem:[%s3 + $0x2] sm:$0x1]
    %v84 = vld [vmem:[%s3 + $0x3] sm:$0x1]
    %v89 = vperm.slane %v81, 0
    %v90 = vperm.slane %v82, 0
    %v91 = vperm.slane %v83, 0
    %v92 = vperm.slane %v84, 0
    %v101 = vunpack.c.l.b16 %v65
    %v102 = vunpack.c.l.b16 %v66
    %v103 = vunpack.c.l.b16 %v67
    %v104 = vunpack.c.l.b16 %v68
    %v105 = vpack.c.b16 %v102, %v101
    %v106 = vpack.c.b16 %v104, %v103
    %vm109 = vcmask 261120
    %v111 = vsel %vm109, %v63, 0
    %113 = vmatpush.bf16.msra.mxu0 0
    %114 = vmatpush.bf16.msra.mxu0 0
    %115 = vmatpush.bf16.msra.mxu0 0
    %116 = vmatpush.bf16.msra.mxu0 0
    %117 = vmatpush.bf16.msra.mxu0 0
    %118 = vmatpush.bf16.msra.mxu0 0
    %119 = vmatpush.bf16.msra.mxu0 %v106
    %120 = vmatpush.bf16.msra.mxu0 %v105
    %121 = vmatmul.bf16.gmra.mxu0 %v111
    %v122 = vpop.f32.mrf.mxu0
    %v123 = vadd.f32 %v89, %v122
    %v124 = vpop.f32.mrf.mxu0
    %125 = vdwg.mxu0
    %v130 = vunpack.c.l.b16 %v69
    %v131 = vunpack.c.l.b16 %v70
    %v132 = vunpack.c.l.b16 %v71
    %v133 = vunpack.c.l.b16 %v72
    %v134 = vpack.c.b16 %v131, %v130
    %v135 = vpack.c.b16 %v133, %v132
    %138 = vmatpush.bf16.msra.mxu0 0
    %139 = vmatpush.bf16.msra.mxu0 0
    %140 = vmatpush.bf16.msra.mxu0 0
    %141 = vmatpush.bf16.msra.mxu0 0
    %142 = vmatpush.bf16.msra.mxu0 0
    %143 = vmatpush.bf16.msra.mxu0 0
    %144 = vmatpush.bf16.msra.mxu0 %v135
    %145 = vmatpush.bf16.msra.mxu0 %v134
    %146 = vmatmul.bf16.gmra.mxu0 %v111
    %v147 = vpop.f32.mrf.mxu0
    %v148 = vadd.f32 %v90, %v147
    %v149 = vpop.f32.mrf.mxu0
    %150 = vdwg.mxu0
    %v155 = vunpack.c.l.b16 %v73
    %v156 = vunpack.c.l.b16 %v74
    %v157 = vunpack.c.l.b16 %v75
    %v158 = vunpack.c.l.b16 %v76
    %v159 = vpack.c.b16 %v156, %v155
    %v160 = vpack.c.b16 %v158, %v157
    %163 = vmatpush.bf16.msra.mxu0 0
    %164 = vmatpush.bf16.msra.mxu0 0
    %165 = vmatpush.bf16.msra.mxu0 0
    %166 = vmatpush.bf16.msra.mxu0 0
    %167 = vmatpush.bf16.msra.mxu0 0
    %168 = vmatpush.bf16.msra.mxu0 0
    %169 = vmatpush.bf16.msra.mxu0 %v160
    %170 = vmatpush.bf16.msra.mxu0 %v159
    %171 = vmatmul.bf16.gmra.mxu0 %v111
    %v172 = vpop.f32.mrf.mxu0
    %v173 = vadd.f32 %v91, %v172
    %v174 = vpop.f32.mrf.mxu0
    %175 = vdwg.mxu0
    %v180 = vunpack.c.l.b16 %v77
    %v181 = vunpack.c.l.b16 %v78
    %v182 = vunpack.c.l.b16 %v79
    %v183 = vunpack.c.l.b16 %v80
    %v184 = vpack.c.b16 %v181, %v180
    %v185 = vpack.c.b16 %v183, %v182
    %188 = vmatpush.bf16.msra.mxu0 0
    %189 = vmatpush.bf16.msra.mxu0 0
    %190 = vmatpush.bf16.msra.mxu0 0
    %191 = vmatpush.bf16.msra.mxu0 0
    %192 = vmatpush.bf16.msra.mxu0 0
    %193 = vmatpush.bf16.msra.mxu0 0
    %194 = vmatpush.bf16.msra.mxu0 %v185
    %195 = vmatpush.bf16.msra.mxu0 %v184
    %196 = vmatmul.bf16.gmra.mxu0 %v111
    %v197 = vpop.f32.mrf.mxu0
    %v198 = vadd.f32 %v92, %v197
    %v199 = vpop.f32.mrf.mxu0
    %200 = vdwg.mxu0
    %v202 = vsel %vm109, %v64, 0
    %204 = vmatpush.bf16.msra.mxu0 0
    %205 = vmatpush.bf16.msra.mxu0 0
    %206 = vmatpush.bf16.msra.mxu0 0
    %207 = vmatpush.bf16.msra.mxu0 0
    %208 = vmatpush.bf16.msra.mxu0 0
    %209 = vmatpush.bf16.msra.mxu0 0
    %210 = vmatpush.bf16.msra.mxu0 %v106
    %211 = vmatpush.bf16.msra.mxu0 %v105
    %212 = vmatmul.bf16.gmra.mxu0 %v202
    %v213 = vpop.f32.mrf.mxu0
    %v214 = vadd.f32 %v89, %v213
    %v215 = vpop.f32.mrf.mxu0
    %216 = vdwg.mxu0
    %217 = vmatpush.bf16.msra.mxu0 0
    %218 = vmatpush.bf16.msra.mxu0 0
    %219 = vmatpush.bf16.msra.mxu0 0
    %220 = vmatpush.bf16.msra.mxu0 0
    %221 = vmatpush.bf16.msra.mxu0 0
    %222 = vmatpush.bf16.msra.mxu0 0
    %223 = vmatpush.bf16.msra.mxu0 %v135
    %224 = vmatpush.bf16.msra.mxu0 %v134
    %225 = vmatmul.bf16.gmra.mxu0 %v202
    %v226 = vpop.f32.mrf.mxu0
    %v227 = vadd.f32 %v90, %v226
    %v228 = vpop.f32.mrf.mxu0
    %229 = vdwg.mxu0
    %230 = vmatpush.bf16.msra.mxu0 0
    %231 = vmatpush.bf16.msra.mxu0 0
    %232 = vmatpush.bf16.msra.mxu0 0
    %233 = vmatpush.bf16.msra.mxu0 0
    %234 = vmatpush.bf16.msra.mxu0 0
    %235 = vmatpush.bf16.msra.mxu0 0
    %236 = vmatpush.bf16.msra.mxu0 %v160
    %237 = vmatpush.bf16.msra.mxu0 %v159
    %238 = vmatmul.bf16.gmra.mxu0 %v202
    %v239 = vpop.f32.mrf.mxu0
    %v240 = vadd.f32 %v91, %v239
    %v241 = vpop.f32.mrf.mxu0
    %242 = vdwg.mxu0
    %243 = vmatpush.bf16.msra.mxu0 0
    %244 = vmatpush.bf16.msra.mxu0 0
    %245 = vmatpush.bf16.msra.mxu0 0
    %246 = vmatpush.bf16.msra.mxu0 0
    %247 = vmatpush.bf16.msra.mxu0 0
    %248 = vmatpush.bf16.msra.mxu0 0
    %249 = vmatpush.bf16.msra.mxu0 %v185
    %250 = vmatpush.bf16.msra.mxu0 %v184
    %251 = vmatmul.bf16.gmra.mxu0 %v202
    %v252 = vpop.f32.mrf.mxu0
    %v253 = vadd.f32 %v92, %v252
    %v254 = vpop.f32.mrf.mxu0
    %255 = vdwg.mxu0
    %v256 = vld [vmem:[%s4] sm:$0xf]
    %v257 = vld [vmem:[%s4 + $0x4] sm:$0xf]
    %v258 = vld [vmem:[%s4 + $0x8] sm:$0xf]
    %v259 = vld [vmem:[%s4 + $0xc] sm:$0xf]
    %v260 = vld [vmem:[%s4 + $0x10] sm:$0xf]
    %v261 = vld [vmem:[%s4 + $0x14] sm:$0xf]
    %v262 = vld [vmem:[%s4 + $0x18] sm:$0xf]
    %v263 = vld [vmem:[%s4 + $0x1c] sm:$0xf]
    %v264 = vld [vmem:[%s4 + $0x20] sm:$0xf]
    %v265 = vld [vmem:[%s4 + $0x24] sm:$0xf]
    %v266 = vld [vmem:[%s4 + $0x28] sm:$0xf]
    %v267 = vld [vmem:[%s4 + $0x2c] sm:$0xf]
    %v268 = vld [vmem:[%s4 + $0x30] sm:$0xf]
    %v269 = vld [vmem:[%s4 + $0x34] sm:$0xf]
    %v270 = vld [vmem:[%s4 + $0x38] sm:$0xf]
    %v271 = vld [vmem:[%s4 + $0x3c] sm:$0xf]
    %v272 = vld [vmem:[%s5] sm:$0x1]
    %v273 = vld [vmem:[%s5 + $0x1] sm:$0x1]
    %v274 = vld [vmem:[%s5 + $0x2] sm:$0x1]
    %v275 = vld [vmem:[%s5 + $0x3] sm:$0x1]
    %v280 = vperm.slane %v272, 0
    %v281 = vperm.slane %v273, 0
    %v282 = vperm.slane %v274, 0
    %v283 = vperm.slane %v275, 0
    %v292 = vunpack.c.l.b16 %v256
    %v293 = vunpack.c.l.b16 %v257
    %v294 = vunpack.c.l.b16 %v258
    %v295 = vunpack.c.l.b16 %v259
    %v296 = vpack.c.b16 %v293, %v292
    %v297 = vpack.c.b16 %v295, %v294
    %300 = vmatpush.bf16.msra.mxu0 0
    %301 = vmatpush.bf16.msra.mxu0 0
    %302 = vmatpush.bf16.msra.mxu0 0
    %303 = vmatpush.bf16.msra.mxu0 0
    %304 = vmatpush.bf16.msra.mxu0 0
    %305 = vmatpush.bf16.msra.mxu0 0
    %306 = vmatpush.bf16.msra.mxu0 %v297
    %307 = vmatpush.bf16.msra.mxu0 %v296
    %308 = vmatmul.bf16.gmra.mxu0 %v111
    %v309 = vpop.f32.mrf.mxu0
    %v310 = vadd.f32 %v280, %v309
    %v311 = vpop.f32.mrf.mxu0
    %312 = vdwg.mxu0
    %v317 = vunpack.c.l.b16 %v260
    %v318 = vunpack.c.l.b16 %v261
    %v319 = vunpack.c.l.b16 %v262
    %v320 = vunpack.c.l.b16 %v263
    %v321 = vpack.c.b16 %v318, %v317
    %v322 = vpack.c.b16 %v320, %v319
    %325 = vmatpush.bf16.msra.mxu0 0
    %326 = vmatpush.bf16.msra.mxu0 0
    %327 = vmatpush.bf16.msra.mxu0 0
    %328 = vmatpush.bf16.msra.mxu0 0
    %329 = vmatpush.bf16.msra.mxu0 0
    %330 = vmatpush.bf16.msra.mxu0 0
    %331 = vmatpush.bf16.msra.mxu0 %v322
    %332 = vmatpush.bf16.msra.mxu0 %v321
    %333 = vmatmul.bf16.gmra.mxu0 %v111
    %v334 = vpop.f32.mrf.mxu0
    %v335 = vadd.f32 %v281, %v334
    %v336 = vpop.f32.mrf.mxu0
    %337 = vdwg.mxu0
    %v342 = vunpack.c.l.b16 %v264
    %v343 = vunpack.c.l.b16 %v265
    %v344 = vunpack.c.l.b16 %v266
    %v345 = vunpack.c.l.b16 %v267
    %v346 = vpack.c.b16 %v343, %v342
    %v347 = vpack.c.b16 %v345, %v344
    %350 = vmatpush.bf16.msra.mxu0 0
    %351 = vmatpush.bf16.msra.mxu0 0
    %352 = vmatpush.bf16.msra.mxu0 0
    %353 = vmatpush.bf16.msra.mxu0 0
    %354 = vmatpush.bf16.msra.mxu0 0
    %355 = vmatpush.bf16.msra.mxu0 0
    %356 = vmatpush.bf16.msra.mxu0 %v347
    %357 = vmatpush.bf16.msra.mxu0 %v346
    %358 = vmatmul.bf16.gmra.mxu0 %v111
    %v359 = vpop.f32.mrf.mxu0
    %v360 = vadd.f32 %v282, %v359
    %v361 = vpop.f32.mrf.mxu0
    %362 = vdwg.mxu0
    %v367 = vunpack.c.l.b16 %v268
    %v368 = vunpack.c.l.b16 %v269
    %v369 = vunpack.c.l.b16 %v270
    %v370 = vunpack.c.l.b16 %v271
    %v371 = vpack.c.b16 %v368, %v367
    %v372 = vpack.c.b16 %v370, %v369
    %375 = vmatpush.bf16.msra.mxu0 0
    %376 = vmatpush.bf16.msra.mxu0 0
    %377 = vmatpush.bf16.msra.mxu0 0
    %378 = vmatpush.bf16.msra.mxu0 0
    %379 = vmatpush.bf16.msra.mxu0 0
    %380 = vmatpush.bf16.msra.mxu0 0
    %381 = vmatpush.bf16.msra.mxu0 %v372
    %382 = vmatpush.bf16.msra.mxu0 %v371
    %383 = vmatmul.bf16.gmra.mxu0 %v111
    %v384 = vpop.f32.mrf.mxu0
    %v385 = vadd.f32 %v283, %v384
    %v386 = vpop.f32.mrf.mxu0
    %387 = vdwg.mxu0
    %388 = vmatpush.bf16.msra.mxu0 0
    %389 = vmatpush.bf16.msra.mxu0 0
    %390 = vmatpush.bf16.msra.mxu0 0
    %391 = vmatpush.bf16.msra.mxu0 0
    %392 = vmatpush.bf16.msra.mxu0 0
    %393 = vmatpush.bf16.msra.mxu0 0
    %394 = vmatpush.bf16.msra.mxu0 %v297
    %395 = vmatpush.bf16.msra.mxu0 %v296
    %396 = vmatmul.bf16.gmra.mxu0 %v202
    %v397 = vpop.f32.mrf.mxu0
    %v398 = vadd.f32 %v280, %v397
    %v399 = vpop.f32.mrf.mxu0
    %400 = vdwg.mxu0
    %401 = vmatpush.bf16.msra.mxu0 0
    %402 = vmatpush.bf16.msra.mxu0 0
    %403 = vmatpush.bf16.msra.mxu0 0
    %404 = vmatpush.bf16.msra.mxu0 0
    %405 = vmatpush.bf16.msra.mxu0 0
    %406 = vmatpush.bf16.msra.mxu0 0
    %407 = vmatpush.bf16.msra.mxu0 %v322
    %408 = vmatpush.bf16.msra.mxu0 %v321
    %409 = vmatmul.bf16.gmra.mxu0 %v202
    %v410 = vpop.f32.mrf.mxu0
    %v411 = vadd.f32 %v281, %v410
    %v412 = vpop.f32.mrf.mxu0
    %413 = vdwg.mxu0
    %414 = vmatpush.bf16.msra.mxu0 0
    %415 = vmatpush.bf16.msra.mxu0 0
    %416 = vmatpush.bf16.msra.mxu0 0
    %417 = vmatpush.bf16.msra.mxu0 0
    %418 = vmatpush.bf16.msra.mxu0 0
    %419 = vmatpush.bf16.msra.mxu0 0
    %420 = vmatpush.bf16.msra.mxu0 %v347
    %421 = vmatpush.bf16.msra.mxu0 %v346
    %422 = vmatmul.bf16.gmra.mxu0 %v202
    %v423 = vpop.f32.mrf.mxu0
    %v424 = vadd.f32 %v282, %v423
    %v425 = vpop.f32.mrf.mxu0
    %426 = vdwg.mxu0
    %427 = vmatpush.bf16.msra.mxu0 0
    %428 = vmatpush.bf16.msra.mxu0 0
    %429 = vmatpush.bf16.msra.mxu0 0
    %430 = vmatpush.bf16.msra.mxu0 0
    %431 = vmatpush.bf16.msra.mxu0 0
    %432 = vmatpush.bf16.msra.mxu0 0
    %433 = vmatpush.bf16.msra.mxu0 %v372
    %434 = vmatpush.bf16.msra.mxu0 %v371
    %435 = vmatmul.bf16.gmra.mxu0 %v202
    %v436 = vpop.f32.mrf.mxu0
    %v437 = vadd.f32 %v283, %v436
    %v438 = vpop.f32.mrf.mxu0
    %439 = vdwg.mxu0
    %v440 = vld [vmem:[%s6] sm:$0xf]
    %v441 = vld [vmem:[%s6 + $0x4] sm:$0xf]
    %v442 = vld [vmem:[%s6 + $0x8] sm:$0xf]
    %v443 = vld [vmem:[%s6 + $0xc] sm:$0xf]
    %v444 = vld [vmem:[%s6 + $0x10] sm:$0xf]
    %v445 = vld [vmem:[%s6 + $0x14] sm:$0xf]
    %v446 = vld [vmem:[%s6 + $0x18] sm:$0xf]
    %v447 = vld [vmem:[%s6 + $0x1c] sm:$0xf]
    %v448 = vld [vmem:[%s6 + $0x20] sm:$0xf]
    %v449 = vld [vmem:[%s6 + $0x24] sm:$0xf]
    %v450 = vld [vmem:[%s6 + $0x28] sm:$0xf]
    %v451 = vld [vmem:[%s6 + $0x2c] sm:$0xf]
    %v452 = vld [vmem:[%s6 + $0x30] sm:$0xf]
    %v453 = vld [vmem:[%s6 + $0x34] sm:$0xf]
    %v454 = vld [vmem:[%s6 + $0x38] sm:$0xf]
    %v455 = vld [vmem:[%s6 + $0x3c] sm:$0xf]
    %v456 = vld [vmem:[%s7] sm:$0x1]
    %v457 = vld [vmem:[%s7 + $0x1] sm:$0x1]
    %v458 = vld [vmem:[%s7 + $0x2] sm:$0x1]
    %v459 = vld [vmem:[%s7 + $0x3] sm:$0x1]
    %v464 = vperm.slane %v456, 0
    %v465 = vperm.slane %v457, 0
    %v466 = vperm.slane %v458, 0
    %v467 = vperm.slane %v459, 0
    %v476 = vunpack.c.l.b16 %v440
    %v477 = vunpack.c.l.b16 %v441
    %v478 = vunpack.c.l.b16 %v442
    %v479 = vunpack.c.l.b16 %v443
    %v480 = vpack.c.b16 %v477, %v476
    %v481 = vpack.c.b16 %v479, %v478
    %484 = vmatpush.bf16.msra.mxu0 0
    %485 = vmatpush.bf16.msra.mxu0 0
    %486 = vmatpush.bf16.msra.mxu0 0
    %487 = vmatpush.bf16.msra.mxu0 0
    %488 = vmatpush.bf16.msra.mxu0 0
    %489 = vmatpush.bf16.msra.mxu0 0
    %490 = vmatpush.bf16.msra.mxu0 %v481
    %491 = vmatpush.bf16.msra.mxu0 %v480
    %492 = vmatmul.bf16.gmra.mxu0 %v111
    %v493 = vpop.f32.mrf.mxu0
    %v494 = vadd.f32 %v464, %v493
    %v495 = vpop.f32.mrf.mxu0
    %496 = vdwg.mxu0
    %v501 = vunpack.c.l.b16 %v444
    %v502 = vunpack.c.l.b16 %v445
    %v503 = vunpack.c.l.b16 %v446
    %v504 = vunpack.c.l.b16 %v447
    %v505 = vpack.c.b16 %v502, %v501
    %v506 = vpack.c.b16 %v504, %v503
    %509 = vmatpush.bf16.msra.mxu0 0
    %510 = vmatpush.bf16.msra.mxu0 0
    %511 = vmatpush.bf16.msra.mxu0 0
    %512 = vmatpush.bf16.msra.mxu0 0
    %513 = vmatpush.bf16.msra.mxu0 0
    %514 = vmatpush.bf16.msra.mxu0 0
    %515 = vmatpush.bf16.msra.mxu0 %v506
    %516 = vmatpush.bf16.msra.mxu0 %v505
    %517 = vmatmul.bf16.gmra.mxu0 %v111
    %v518 = vpop.f32.mrf.mxu0
    %v519 = vadd.f32 %v465, %v518
    %v520 = vpop.f32.mrf.mxu0
    %521 = vdwg.mxu0
    %v526 = vunpack.c.l.b16 %v448
    %v527 = vunpack.c.l.b16 %v449
    %v528 = vunpack.c.l.b16 %v450
    %v529 = vunpack.c.l.b16 %v451
    %v530 = vpack.c.b16 %v527, %v526
    %v531 = vpack.c.b16 %v529, %v528
    %534 = vmatpush.bf16.msra.mxu0 0
    %535 = vmatpush.bf16.msra.mxu0 0
    %536 = vmatpush.bf16.msra.mxu0 0
    %537 = vmatpush.bf16.msra.mxu0 0
    %538 = vmatpush.bf16.msra.mxu0 0
    %539 = vmatpush.bf16.msra.mxu0 0
    %540 = vmatpush.bf16.msra.mxu0 %v531
    %541 = vmatpush.bf16.msra.mxu0 %v530
    %542 = vmatmul.bf16.gmra.mxu0 %v111
    %v543 = vpop.f32.mrf.mxu0
    %v544 = vadd.f32 %v466, %v543
    %v545 = vpop.f32.mrf.mxu0
    %546 = vdwg.mxu0
    %v551 = vunpack.c.l.b16 %v452
    %v552 = vunpack.c.l.b16 %v453
    %v553 = vunpack.c.l.b16 %v454
    %v554 = vunpack.c.l.b16 %v455
    %v555 = vpack.c.b16 %v552, %v551
    %v556 = vpack.c.b16 %v554, %v553
    %559 = vmatpush.bf16.msra.mxu0 0
    %560 = vmatpush.bf16.msra.mxu0 0
    %561 = vmatpush.bf16.msra.mxu0 0
    %562 = vmatpush.bf16.msra.mxu0 0
    %563 = vmatpush.bf16.msra.mxu0 0
    %564 = vmatpush.bf16.msra.mxu0 0
    %565 = vmatpush.bf16.msra.mxu0 %v556
    %566 = vmatpush.bf16.msra.mxu0 %v555
    %567 = vmatmul.bf16.gmra.mxu0 %v111
    %v568 = vpop.f32.mrf.mxu0
    %v569 = vadd.f32 %v467, %v568
    %v570 = vpop.f32.mrf.mxu0
    %571 = vdwg.mxu0
    %572 = vmatpush.bf16.msra.mxu0 0
    %573 = vmatpush.bf16.msra.mxu0 0
    %574 = vmatpush.bf16.msra.mxu0 0
    %575 = vmatpush.bf16.msra.mxu0 0
    %576 = vmatpush.bf16.msra.mxu0 0
    %577 = vmatpush.bf16.msra.mxu0 0
    %578 = vmatpush.bf16.msra.mxu0 %v481
    %579 = vmatpush.bf16.msra.mxu0 %v480
    %580 = vmatmul.bf16.gmra.mxu0 %v202
    %v581 = vpop.f32.mrf.mxu0
    %v582 = vadd.f32 %v464, %v581
    %v583 = vpop.f32.mrf.mxu0
    %584 = vdwg.mxu0
    %585 = vmatpush.bf16.msra.mxu0 0
    %586 = vmatpush.bf16.msra.mxu0 0
    %587 = vmatpush.bf16.msra.mxu0 0
    %588 = vmatpush.bf16.msra.mxu0 0
    %589 = vmatpush.bf16.msra.mxu0 0
    %590 = vmatpush.bf16.msra.mxu0 0
    %591 = vmatpush.bf16.msra.mxu0 %v506
    %592 = vmatpush.bf16.msra.mxu0 %v505
    %593 = vmatmul.bf16.gmra.mxu0 %v202
    %v594 = vpop.f32.mrf.mxu0
    %v595 = vadd.f32 %v465, %v594
    %v596 = vpop.f32.mrf.mxu0
    %597 = vdwg.mxu0
    %598 = vmatpush.bf16.msra.mxu0 0
    %599 = vmatpush.bf16.msra.mxu0 0
    %600 = vmatpush.bf16.msra.mxu0 0
    %601 = vmatpush.bf16.msra.mxu0 0
    %602 = vmatpush.bf16.msra.mxu0 0
    %603 = vmatpush.bf16.msra.mxu0 0
    %604 = vmatpush.bf16.msra.mxu0 %v531
    %605 = vmatpush.bf16.msra.mxu0 %v530
    %606 = vmatmul.bf16.gmra.mxu0 %v202
    %v607 = vpop.f32.mrf.mxu0
    %v608 = vadd.f32 %v466, %v607
    %v609 = vpop.f32.mrf.mxu0
    %610 = vdwg.mxu0
    %611 = vmatpush.bf16.msra.mxu0 0
    %612 = vmatpush.bf16.msra.mxu0 0
    %613 = vmatpush.bf16.msra.mxu0 0
    %614 = vmatpush.bf16.msra.mxu0 0
    %615 = vmatpush.bf16.msra.mxu0 0
    %616 = vmatpush.bf16.msra.mxu0 0
    %617 = vmatpush.bf16.msra.mxu0 %v556
    %618 = vmatpush.bf16.msra.mxu0 %v555
    %619 = vmatmul.bf16.gmra.mxu0 %v202
    %v620 = vpop.f32.mrf.mxu0
    %v621 = vadd.f32 %v467, %v620
    %v622 = vpop.f32.mrf.mxu0
    %623 = vdwg.mxu0
    %v624 = vpack.c.bf16 %v123, %v123
    %v625 = vpack.c.bf16 %v148, %v148
    %v626 = vpack.c.bf16 %v173, %v173
    %v627 = vpack.c.bf16 %v198, %v198
    %v628 = vpack.c.bf16 %v214, %v214
    %v629 = vpack.c.bf16 %v227, %v227
    %v630 = vpack.c.bf16 %v240, %v240
    %v631 = vpack.c.bf16 %v253, %v253
    %v632 = vpack.c.bf16 %v310, %v310
    %v633 = vpack.c.bf16 %v335, %v335
    %v634 = vpack.c.bf16 %v360, %v360
    %v635 = vpack.c.bf16 %v385, %v385
    %v636 = vpack.c.bf16 %v398, %v398
    %v637 = vpack.c.bf16 %v411, %v411
    %v638 = vpack.c.bf16 %v424, %v424
    %v639 = vpack.c.bf16 %v437, %v437
    %vm640 = vcmask 64512
    %v642 = vsel %vm640, %v624, 0
    %v645 = vsel %vm640, %v632, 0
    %647 = vmatpush.bf16.xpose.msra.mxu0 0
    %648 = vmatpush.bf16.xpose.msra.mxu0 0
    %649 = vmatpush.bf16.xpose.msra.mxu0 0
    %650 = vmatpush.bf16.xpose.msra.mxu0 0
    %651 = vmatpush.bf16.xpose.msra.mxu0 0
    %652 = vmatpush.bf16.xpose.msra.mxu0 0
    %653 = vmatpush.bf16.xpose.msra.mxu0 0
    %654 = vmatpush.bf16.xpose.msra.mxu0 %v645
    %655 = vmatmul.bf16.gmra.mxu0 %v642
    %v656 = vpop.f32.mrf.mxu0
    %v657 = vadd.f32 0.0, %v656
    %v658 = vpop.f32.mrf.mxu0
    %659 = vdwg.mxu0
    %v661 = vsel %vm640, %v625, 0
    %v664 = vsel %vm640, %v633, 0
    %666 = vmatpush.bf16.xpose.msra.mxu0 0
    %667 = vmatpush.bf16.xpose.msra.mxu0 0
    %668 = vmatpush.bf16.xpose.msra.mxu0 0
    %669 = vmatpush.bf16.xpose.msra.mxu0 0
    %670 = vmatpush.bf16.xpose.msra.mxu0 0
    %671 = vmatpush.bf16.xpose.msra.mxu0 0
    %672 = vmatpush.bf16.xpose.msra.mxu0 0
    %673 = vmatpush.bf16.xpose.msra.mxu0 %v664
    %674 = vmatmul.bf16.gmra.mxu0 %v661
    %v675 = vpop.f32.mrf.mxu0
    %v676 = vadd.f32 0.0, %v675
    %v677 = vpop.f32.mrf.mxu0
    %678 = vdwg.mxu0
    %v680 = vsel %vm640, %v626, 0
    %v683 = vsel %vm640, %v634, 0
    %685 = vmatpush.bf16.xpose.msra.mxu0 0
    %686 = vmatpush.bf16.xpose.msra.mxu0 0
    %687 = vmatpush.bf16.xpose.msra.mxu0 0
    %688 = vmatpush.bf16.xpose.msra.mxu0 0
    %689 = vmatpush.bf16.xpose.msra.mxu0 0
    %690 = vmatpush.bf16.xpose.msra.mxu0 0
    %691 = vmatpush.bf16.xpose.msra.mxu0 0
    %692 = vmatpush.bf16.xpose.msra.mxu0 %v683
    %693 = vmatmul.bf16.gmra.mxu0 %v680
    %v694 = vpop.f32.mrf.mxu0
    %v695 = vadd.f32 0.0, %v694
    %v696 = vpop.f32.mrf.mxu0
    %697 = vdwg.mxu0
    %v699 = vsel %vm640, %v627, 0
    %v702 = vsel %vm640, %v635, 0
    %704 = vmatpush.bf16.xpose.msra.mxu0 0
    %705 = vmatpush.bf16.xpose.msra.mxu0 0
    %706 = vmatpush.bf16.xpose.msra.mxu0 0
    %707 = vmatpush.bf16.xpose.msra.mxu0 0
    %708 = vmatpush.bf16.xpose.msra.mxu0 0
    %709 = vmatpush.bf16.xpose.msra.mxu0 0
    %710 = vmatpush.bf16.xpose.msra.mxu0 0
    %711 = vmatpush.bf16.xpose.msra.mxu0 %v702
    %712 = vmatmul.bf16.gmra.mxu0 %v699
    %v713 = vpop.f32.mrf.mxu0
    %v714 = vadd.f32 0.0, %v713
    %v715 = vpop.f32.mrf.mxu0
    %716 = vdwg.mxu0
    %v718 = vsel %vm640, %v628, 0
    %v721 = vsel %vm640, %v636, 0
    %723 = vmatpush.bf16.xpose.msra.mxu0 0
    %724 = vmatpush.bf16.xpose.msra.mxu0 0
    %725 = vmatpush.bf16.xpose.msra.mxu0 0
    %726 = vmatpush.bf16.xpose.msra.mxu0 0
    %727 = vmatpush.bf16.xpose.msra.mxu0 0
    %728 = vmatpush.bf16.xpose.msra.mxu0 0
    %729 = vmatpush.bf16.xpose.msra.mxu0 0
    %730 = vmatpush.bf16.xpose.msra.mxu0 %v721
    %731 = vmatmul.bf16.gmra.mxu0 %v718
    %v732 = vpop.f32.mrf.mxu0
    %v733 = vadd.f32 0.0, %v732
    %v734 = vpop.f32.mrf.mxu0
    %735 = vdwg.mxu0
    %v737 = vsel %vm640, %v629, 0
    %v740 = vsel %vm640, %v637, 0
    %742 = vmatpush.bf16.xpose.msra.mxu0 0
    %743 = vmatpush.bf16.xpose.msra.mxu0 0
    %744 = vmatpush.bf16.xpose.msra.mxu0 0
    %745 = vmatpush.bf16.xpose.msra.mxu0 0
    %746 = vmatpush.bf16.xpose.msra.mxu0 0
    %747 = vmatpush.bf16.xpose.msra.mxu0 0
    %748 = vmatpush.bf16.xpose.msra.mxu0 0
    %749 = vmatpush.bf16.xpose.msra.mxu0 %v740
    %750 = vmatmul.bf16.gmra.mxu0 %v737
    %v751 = vpop.f32.mrf.mxu0
    %v752 = vadd.f32 0.0, %v751
    %v753 = vpop.f32.mrf.mxu0
    %754 = vdwg.mxu0
    %v756 = vsel %vm640, %v630, 0
    %v759 = vsel %vm640, %v638, 0
    %761 = vmatpush.bf16.xpose.msra.mxu0 0
    %762 = vmatpush.bf16.xpose.msra.mxu0 0
    %763 = vmatpush.bf16.xpose.msra.mxu0 0
    %764 = vmatpush.bf16.xpose.msra.mxu0 0
    %765 = vmatpush.bf16.xpose.msra.mxu0 0
    %766 = vmatpush.bf16.xpose.msra.mxu0 0
    %767 = vmatpush.bf16.xpose.msra.mxu0 0
    %768 = vmatpush.bf16.xpose.msra.mxu0 %v759
    %769 = vmatmul.bf16.gmra.mxu0 %v756
    %v770 = vpop.f32.mrf.mxu0
    %v771 = vadd.f32 0.0, %v770
    %v772 = vpop.f32.mrf.mxu0
    %773 = vdwg.mxu0
    %v775 = vsel %vm640, %v631, 0
    %v778 = vsel %vm640, %v639, 0
    %780 = vmatpush.bf16.xpose.msra.mxu0 0
    %781 = vmatpush.bf16.xpose.msra.mxu0 0
    %782 = vmatpush.bf16.xpose.msra.mxu0 0
    %783 = vmatpush.bf16.xpose.msra.mxu0 0
    %784 = vmatpush.bf16.xpose.msra.mxu0 0
    %785 = vmatpush.bf16.xpose.msra.mxu0 0
    %786 = vmatpush.bf16.xpose.msra.mxu0 0
    %787 = vmatpush.bf16.xpose.msra.mxu0 %v778
    %788 = vmatmul.bf16.gmra.mxu0 %v775
    %v789 = vpop.f32.mrf.mxu0
    %v790 = vadd.f32 0.0, %v789
    %v791 = vpop.f32.mrf.mxu0
    %792 = vdwg.mxu0
    %v793 = vmul.f32 %v657, 0.35355338
    %v794 = vmul.f32 %v676, 0.35355338
    %v795 = vmul.f32 %v695, 0.35355338
    %v796 = vmul.f32 %v714, 0.35355338
    %v797 = vmul.f32 %v733, 0.35355338
    %v798 = vmul.f32 %v752, 0.35355338
    %v799 = vmul.f32 %v771, 0.35355338
    %v800 = vmul.f32 %v790, 0.35355338
    %v801 = vlaneseq
    %v802 = vand.u32 %v801, 127
    %v803 = vld [vmem:[%s1] sm:$0x1]
    %v804 = vld [vmem:[%s1 + $0x1] sm:$0x1]
    %v805 = vld [vmem:[%s1 + $0x2] sm:$0x1]
    %v806 = vld [vmem:[%s1 + $0x3] sm:$0x1]
    %v807 = vld [vmem:[%s1 + $0x4] sm:$0x1]
    %v808 = vld [vmem:[%s1 + $0x5] sm:$0x1]
    %v809 = vld [vmem:[%s1 + $0x6] sm:$0x1]
    %v810 = vld [vmem:[%s1 + $0x7] sm:$0x1]
    %v811 = vperm.slane %v803, 0
    %v812 = vperm.slane %v804, 0
    %v813 = vperm.slane %v805, 0
    %v814 = vperm.slane %v806, 0
    %v815 = vperm.slane %v807, 0
    %v816 = vperm.slane %v808, 0
    %v817 = vperm.slane %v809, 0
    %v818 = vperm.slane %v810, 0
    %819 = vset.pattern.permute.xlu0 0
    %820 = vperm.xlu0 %819, %v811
    %v821 = vpop.permute.xlu0 %820
    %822 = vset.pattern.permute.xlu0 0
    %823 = vperm.xlu0 %822, %v812
    %v824 = vpop.permute.xlu0 %823
    %825 = vset.pattern.permute.xlu0 0
    %826 = vperm.xlu0 %825, %v813
    %v827 = vpop.permute.xlu0 %826
    %828 = vset.pattern.permute.xlu0 0
    %829 = vperm.xlu0 %828, %v814
    %v830 = vpop.permute.xlu0 %829
    %831 = vset.pattern.permute.xlu0 0
    %832 = vperm.xlu0 %831, %v815
    %v833 = vpop.permute.xlu0 %832
    %834 = vset.pattern.permute.xlu0 0
    %835 = vperm.xlu0 %834, %v816
    %v836 = vpop.permute.xlu0 %835
    %837 = vset.pattern.permute.xlu0 0
    %838 = vperm.xlu0 %837, %v817
    %v839 = vpop.permute.xlu0 %838
    %840 = vset.pattern.permute.xlu0 0
    %841 = vperm.xlu0 %840, %v818
    %v842 = vpop.permute.xlu0 %841
    %vm843 = vcmp.lt.s32.totalorder %v802, %v821
    %vm844 = vcmp.lt.s32.totalorder %v802, %v824
    %vm845 = vcmp.lt.s32.totalorder %v802, %v827
    %vm846 = vcmp.lt.s32.totalorder %v802, %v830
    %vm847 = vcmp.lt.s32.totalorder %v802, %v833
    %vm848 = vcmp.lt.s32.totalorder %v802, %v836
    %vm849 = vcmp.lt.s32.totalorder %v802, %v839
    %vm850 = vcmp.lt.s32.totalorder %v802, %v842
    %v851 = vsel %vm843, %v793, -1000000.0
    %v852 = vsel %vm844, %v794, -1000000.0
    %v853 = vsel %vm845, %v795, -1000000.0
    %v854 = vsel %vm846, %v796, -1000000.0
    %v855 = vsel %vm847, %v797, -1000000.0
    %v856 = vsel %vm848, %v798, -1000000.0
    %v857 = vsel %vm849, %v799, -1000000.0
    %v858 = vsel %vm850, %v800, -1000000.0
    %v859 = vsel %vm640, %v851, -inf
    %860 = vmax.xlane.f32.xlu0 %v859
    %v861 = vpop.xlane.xlu0 %860
    %v862 = vsel %vm640, %v852, -inf
    %863 = vmax.xlane.f32.xlu0 %v862
    %v864 = vpop.xlane.xlu0 %863
    %v865 = vsel %vm640, %v853, -inf
    %866 = vmax.xlane.f32.xlu0 %v865
    %v867 = vpop.xlane.xlu0 %866
    %v868 = vsel %vm640, %v854, -inf
    %869 = vmax.xlane.f32.xlu0 %v868
    %v870 = vpop.xlane.xlu0 %869
    %v871 = vsel %vm640, %v855, -inf
    %872 = vmax.xlane.f32.xlu0 %v871
    %v873 = vpop.xlane.xlu0 %872
    %v874 = vsel %vm640, %v856, -inf
    %875 = vmax.xlane.f32.xlu0 %v874
    %v876 = vpop.xlane.xlu0 %875
    %v877 = vsel %vm640, %v857, -inf
    %878 = vmax.xlane.f32.xlu0 %v877
    %v879 = vpop.xlane.xlu0 %878
    %v880 = vsel %vm640, %v858, -inf
    %881 = vmax.xlane.f32.xlu0 %v880
    %v882 = vpop.xlane.xlu0 %881
    %v883 = vsub.f32 %v851, %v861
    %v884 = vsub.f32 %v852, %v864
    %v885 = vsub.f32 %v853, %v867
    %v886 = vsub.f32 %v854, %v870
    %v887 = vsub.f32 %v855, %v873
    %v888 = vsub.f32 %v856, %v876
    %v889 = vsub.f32 %v857, %v879
    %v890 = vsub.f32 %v858, %v882
    %v891 = vmul.f32 %v883, 1.442695
    %v892 = vpow.pop %v891
    %v893 = vmul.f32 %v884, 1.442695
    %v894 = vpow.pop %v893
    %v895 = vmul.f32 %v885, 1.442695
    %v896 = vpow.pop %v895
    %v897 = vmul.f32 %v886, 1.442695
    %v898 = vpow.pop %v897
    %v899 = vmul.f32 %v887, 1.442695
    %v900 = vpow.pop %v899
    %v901 = vmul.f32 %v888, 1.442695
    %v902 = vpow.pop %v901
    %v903 = vmul.f32 %v889, 1.442695
    %v904 = vpow.pop %v903
    %v905 = vmul.f32 %v890, 1.442695
    %v906 = vpow.pop %v905
    %v907 = vsel %vm640, %v892, 0.0
    %908 = vadd.xlane.f32.xlu0 %v907
    %v909 = vpop.xlane.xlu0 %908
    %v910 = vsel %vm640, %v894, 0.0
    %911 = vadd.xlane.f32.xlu0 %v910
    %v912 = vpop.xlane.xlu0 %911
    %v913 = vsel %vm640, %v896, 0.0
    %914 = vadd.xlane.f32.xlu0 %v913
    %v915 = vpop.xlane.xlu0 %914
    %v916 = vsel %vm640, %v898, 0.0
    %917 = vadd.xlane.f32.xlu0 %v916
    %v918 = vpop.xlane.xlu0 %917
    %v919 = vsel %vm640, %v900, 0.0
    %920 = vadd.xlane.f32.xlu0 %v919
    %v921 = vpop.xlane.xlu0 %920
    %v922 = vsel %vm640, %v902, 0.0
    %923 = vadd.xlane.f32.xlu0 %v922
    %v924 = vpop.xlane.xlu0 %923
    %v925 = vsel %vm640, %v904, 0.0
    %926 = vadd.xlane.f32.xlu0 %v925
    %v927 = vpop.xlane.xlu0 %926
    %v928 = vsel %vm640, %v906, 0.0
    %929 = vadd.xlane.f32.xlu0 %v928
    %v930 = vpop.xlane.xlu0 %929
    %v931 = vrcp.pop %v909
    %v932 = vrcp.pop %v912
    %v933 = vrcp.pop %v915
    %v934 = vrcp.pop %v918
    %v935 = vrcp.pop %v921
    %v936 = vrcp.pop %v924
    %v937 = vrcp.pop %v927
    %v938 = vrcp.pop %v930
    %v939 = vmul.f32 %v892, %v931
    %v940 = vmul.f32 %v894, %v932
    %v941 = vmul.f32 %v896, %v933
    %v942 = vmul.f32 %v898, %v934
    %v943 = vmul.f32 %v900, %v935
    %v944 = vmul.f32 %v902, %v936
    %v945 = vmul.f32 %v904, %v937
    %v946 = vmul.f32 %v906, %v938
    %v947 = vpack.c.bf16 %v939, %v939
    %v948 = vpack.c.bf16 %v940, %v940
    %v949 = vpack.c.bf16 %v941, %v941
    %v950 = vpack.c.bf16 %v942, %v942
    %v951 = vpack.c.bf16 %v943, %v943
    %v952 = vpack.c.bf16 %v944, %v944
    %v953 = vpack.c.bf16 %v945, %v945
    %v954 = vpack.c.bf16 %v946, %v946
    %v955 = vpack.c.bf16 %v494, %v494
    %v956 = vpack.c.bf16 %v519, %v519
    %v957 = vpack.c.bf16 %v544, %v544
    %v958 = vpack.c.bf16 %v569, %v569
    %v959 = vpack.c.bf16 %v582, %v582
    %v960 = vpack.c.bf16 %v595, %v595
    %v961 = vpack.c.bf16 %v608, %v608
    %v962 = vpack.c.bf16 %v621, %v621
    %v964 = vsel %vm640, %v947, 0
    %vm966 = vcmask 1043456
    %v968 = vsel %vm966, %v955, 0
    %970 = vmatpush.bf16.msra.mxu0 0
    %971 = vmatpush.bf16.msra.mxu0 0
    %972 = vmatpush.bf16.msra.mxu0 0
    %973 = vmatpush.bf16.msra.mxu0 0
    %974 = vmatpush.bf16.msra.mxu0 0
    %975 = vmatpush.bf16.msra.mxu0 0
    %976 = vmatpush.bf16.msra.mxu0 0
    %977 = vmatpush.bf16.msra.mxu0 %v968
    %978 = vmatmul.bf16.gmra.mxu0 %v964
    %v979 = vpop.f32.mrf.mxu0
    %v980 = vadd.f32 0.0, %v979
    %v981 = vpop.f32.mrf.mxu0
    %982 = vdwg.mxu0
    %v984 = vsel %vm640, %v948, 0
    %v987 = vsel %vm966, %v956, 0
    %989 = vmatpush.bf16.msra.mxu0 0
    %990 = vmatpush.bf16.msra.mxu0 0
    %991 = vmatpush.bf16.msra.mxu0 0
    %992 = vmatpush.bf16.msra.mxu0 0
    %993 = vmatpush.bf16.msra.mxu0 0
    %994 = vmatpush.bf16.msra.mxu0 0
    %995 = vmatpush.bf16.msra.mxu0 0
    %996 = vmatpush.bf16.msra.mxu0 %v987
    %997 = vmatmul.bf16.gmra.mxu0 %v984
    %v998 = vpop.f32.mrf.mxu0
    %v999 = vadd.f32 0.0, %v998
    %v1000 = vpop.f32.mrf.mxu0
    %1001 = vdwg.mxu0
    %v1003 = vsel %vm640, %v949, 0
    %v1006 = vsel %vm966, %v957, 0
    %1008 = vmatpush.bf16.msra.mxu0 0
    %1009 = vmatpush.bf16.msra.mxu0 0
    %1010 = vmatpush.bf16.msra.mxu0 0
    %1011 = vmatpush.bf16.msra.mxu0 0
    %1012 = vmatpush.bf16.msra.mxu0 0
    %1013 = vmatpush.bf16.msra.mxu0 0
    %1014 = vmatpush.bf16.msra.mxu0 0
    %1015 = vmatpush.bf16.msra.mxu0 %v1006
    %1016 = vmatmul.bf16.gmra.mxu0 %v1003
    %v1017 = vpop.f32.mrf.mxu0
    %v1018 = vadd.f32 0.0, %v1017
    %v1019 = vpop.f32.mrf.mxu0
    %1020 = vdwg.mxu0
    %v1022 = vsel %vm640, %v950, 0
    %v1025 = vsel %vm966, %v958, 0
    %1027 = vmatpush.bf16.msra.mxu0 0
    %1028 = vmatpush.bf16.msra.mxu0 0
    %1029 = vmatpush.bf16.msra.mxu0 0
    %1030 = vmatpush.bf16.msra.mxu0 0
    %1031 = vmatpush.bf16.msra.mxu0 0
    %1032 = vmatpush.bf16.msra.mxu0 0
    %1033 = vmatpush.bf16.msra.mxu0 0
    %1034 = vmatpush.bf16.msra.mxu0 %v1025
    %1035 = vmatmul.bf16.gmra.mxu0 %v1022
    %v1036 = vpop.f32.mrf.mxu0
    %v1037 = vadd.f32 0.0, %v1036
    %v1038 = vpop.f32.mrf.mxu0
    %1039 = vdwg.mxu0
    %v1041 = vsel %vm640, %v951, 0
    %v1044 = vsel %vm966, %v959, 0
    %1046 = vmatpush.bf16.msra.mxu0 0
    %1047 = vmatpush.bf16.msra.mxu0 0
    %1048 = vmatpush.bf16.msra.mxu0 0
    %1049 = vmatpush.bf16.msra.mxu0 0
    %1050 = vmatpush.bf16.msra.mxu0 0
    %1051 = vmatpush.bf16.msra.mxu0 0
    %1052 = vmatpush.bf16.msra.mxu0 0
    %1053 = vmatpush.bf16.msra.mxu0 %v1044
    %1054 = vmatmul.bf16.gmra.mxu0 %v1041
    %v1055 = vpop.f32.mrf.mxu0
    %v1056 = vadd.f32 0.0, %v1055
    %v1057 = vpop.f32.mrf.mxu0
    %1058 = vdwg.mxu0
    %v1060 = vsel %vm640, %v952, 0
    %v1063 = vsel %vm966, %v960, 0
    %1065 = vmatpush.bf16.msra.mxu0 0
    %1066 = vmatpush.bf16.msra.mxu0 0
    %1067 = vmatpush.bf16.msra.mxu0 0
    %1068 = vmatpush.bf16.msra.mxu0 0
    %1069 = vmatpush.bf16.msra.mxu0 0
    %1070 = vmatpush.bf16.msra.mxu0 0
    %1071 = vmatpush.bf16.msra.mxu0 0
    %1072 = vmatpush.bf16.msra.mxu0 %v1063
    %1073 = vmatmul.bf16.gmra.mxu0 %v1060
    %v1074 = vpop.f32.mrf.mxu0
    %v1075 = vadd.f32 0.0, %v1074
    %v1076 = vpop.f32.mrf.mxu0
    %1077 = vdwg.mxu0
    %v1079 = vsel %vm640, %v953, 0
    %v1082 = vsel %vm966, %v961, 0
    %1084 = vmatpush.bf16.msra.mxu0 0
    %1085 = vmatpush.bf16.msra.mxu0 0
    %1086 = vmatpush.bf16.msra.mxu0 0
    %1087 = vmatpush.bf16.msra.mxu0 0
    %1088 = vmatpush.bf16.msra.mxu0 0
    %1089 = vmatpush.bf16.msra.mxu0 0
    %1090 = vmatpush.bf16.msra.mxu0 0
    %1091 = vmatpush.bf16.msra.mxu0 %v1082
    %1092 = vmatmul.bf16.gmra.mxu0 %v1079
    %v1093 = vpop.f32.mrf.mxu0
    %v1094 = vadd.f32 0.0, %v1093
    %v1095 = vpop.f32.mrf.mxu0
    %1096 = vdwg.mxu0
    %v1098 = vsel %vm640, %v954, 0
    %v1101 = vsel %vm966, %v962, 0
    %1103 = vmatpush.bf16.msra.mxu0 0
    %1104 = vmatpush.bf16.msra.mxu0 0
    %1105 = vmatpush.bf16.msra.mxu0 0
    %1106 = vmatpush.bf16.msra.mxu0 0
    %1107 = vmatpush.bf16.msra.mxu0 0
    %1108 = vmatpush.bf16.msra.mxu0 0
    %1109 = vmatpush.bf16.msra.mxu0 0
    %1110 = vmatpush.bf16.msra.mxu0 %v1101
    %1111 = vmatmul.bf16.gmra.mxu0 %v1098
    %v1112 = vpop.f32.mrf.mxu0
    %v1113 = vadd.f32 0.0, %v1112
    %v1114 = vpop.f32.mrf.mxu0
    %1115 = vdwg.mxu0
    %v1116 = vpack.c.bf16 %v980, %v980
    %v1117 = vpack.c.bf16 %v999, %v999
    %v1118 = vpack.c.bf16 %v1018, %v1018
    %v1119 = vpack.c.bf16 %v1037, %v1037
    %v1120 = vpack.c.bf16 %v1056, %v1056
    %v1121 = vpack.c.bf16 %v1075, %v1075
    %v1122 = vpack.c.bf16 %v1094, %v1094
    %v1123 = vpack.c.bf16 %v1113, %v1113
    %v1124 = vld [vmem:[%s8] sm:$0xf]
    %v1125 = vld [vmem:[%s8 + $0x4] sm:$0xf]
    %v1126 = vld [vmem:[%s8 + $0x8] sm:$0xf]
    %v1127 = vld [vmem:[%s8 + $0xc] sm:$0xf]
    %v1129 = vsel %vm640, %v1116, 0
    %v1132 = vsel %vm966, %v1124, 0
    %1134 = vmatpush.bf16.msra.mxu0 0
    %1135 = vmatpush.bf16.msra.mxu0 0
    %1136 = vmatpush.bf16.msra.mxu0 0
    %1137 = vmatpush.bf16.msra.mxu0 0
    %1138 = vmatpush.bf16.msra.mxu0 0
    %1139 = vmatpush.bf16.msra.mxu0 0
    %1140 = vmatpush.bf16.msra.mxu0 0
    %1141 = vmatpush.bf16.msra.mxu0 %v1132
    %1142 = vmatmul.bf16.gmra.mxu0 %v1129
    %v1143 = vpop.f32.mrf.mxu0
    %v1144 = vadd.f32 0.0, %v1143
    %v1145 = vpop.f32.mrf.mxu0
    %1146 = vdwg.mxu0
    %v1148 = vsel %vm640, %v1117, 0
    %v1151 = vsel %vm966, %v1125, 0
    %1153 = vmatpush.bf16.msra.mxu0 0
    %1154 = vmatpush.bf16.msra.mxu0 0
    %1155 = vmatpush.bf16.msra.mxu0 0
    %1156 = vmatpush.bf16.msra.mxu0 0
    %1157 = vmatpush.bf16.msra.mxu0 0
    %1158 = vmatpush.bf16.msra.mxu0 0
    %1159 = vmatpush.bf16.msra.mxu0 0
    %1160 = vmatpush.bf16.msra.mxu0 %v1151
    %1161 = vmatmul.bf16.gmra.mxu0 %v1148
    %v1162 = vpop.f32.mrf.mxu0
    %v1163 = vadd.f32 0.0, %v1162
    %v1164 = vpop.f32.mrf.mxu0
    %1165 = vdwg.mxu0
    %v1167 = vsel %vm640, %v1118, 0
    %v1170 = vsel %vm966, %v1126, 0
    %1172 = vmatpush.bf16.msra.mxu0 0
    %1173 = vmatpush.bf16.msra.mxu0 0
    %1174 = vmatpush.bf16.msra.mxu0 0
    %1175 = vmatpush.bf16.msra.mxu0 0
    %1176 = vmatpush.bf16.msra.mxu0 0
    %1177 = vmatpush.bf16.msra.mxu0 0
    %1178 = vmatpush.bf16.msra.mxu0 0
    %1179 = vmatpush.bf16.msra.mxu0 %v1170
    %1180 = vmatmul.bf16.gmra.mxu0 %v1167
    %v1181 = vpop.f32.mrf.mxu0
    %v1182 = vadd.f32 0.0, %v1181
    %v1183 = vpop.f32.mrf.mxu0
    %1184 = vdwg.mxu0
    %v1186 = vsel %vm640, %v1119, 0
    %v1189 = vsel %vm966, %v1127, 0
    %1191 = vmatpush.bf16.msra.mxu0 0
    %1192 = vmatpush.bf16.msra.mxu0 0
    %1193 = vmatpush.bf16.msra.mxu0 0
    %1194 = vmatpush.bf16.msra.mxu0 0
    %1195 = vmatpush.bf16.msra.mxu0 0
    %1196 = vmatpush.bf16.msra.mxu0 0
    %1197 = vmatpush.bf16.msra.mxu0 0
    %1198 = vmatpush.bf16.msra.mxu0 %v1189
    %1199 = vmatmul.bf16.gmra.mxu0 %v1186
    %v1200 = vpop.f32.mrf.mxu0
    %v1201 = vadd.f32 0.0, %v1200
    %v1202 = vpop.f32.mrf.mxu0
    %1203 = vdwg.mxu0
    %v1205 = vsel %vm640, %v1120, 0
    %1207 = vmatpush.bf16.msra.mxu0 0
    %1208 = vmatpush.bf16.msra.mxu0 0
    %1209 = vmatpush.bf16.msra.mxu0 0
    %1210 = vmatpush.bf16.msra.mxu0 0
    %1211 = vmatpush.bf16.msra.mxu0 0
    %1212 = vmatpush.bf16.msra.mxu0 0
    %1213 = vmatpush.bf16.msra.mxu0 0
    %1214 = vmatpush.bf16.msra.mxu0 %v1132
    %1215 = vmatmul.bf16.gmra.mxu0 %v1205
    %v1216 = vpop.f32.mrf.mxu0
    %v1217 = vadd.f32 0.0, %v1216
    %v1218 = vpop.f32.mrf.mxu0
    %1219 = vdwg.mxu0
    %v1221 = vsel %vm640, %v1121, 0
    %1223 = vmatpush.bf16.msra.mxu0 0
    %1224 = vmatpush.bf16.msra.mxu0 0
    %1225 = vmatpush.bf16.msra.mxu0 0
    %1226 = vmatpush.bf16.msra.mxu0 0
    %1227 = vmatpush.bf16.msra.mxu0 0
    %1228 = vmatpush.bf16.msra.mxu0 0
    %1229 = vmatpush.bf16.msra.mxu0 0
    %1230 = vmatpush.bf16.msra.mxu0 %v1151
    %1231 = vmatmul.bf16.gmra.mxu0 %v1221
    %v1232 = vpop.f32.mrf.mxu0
    %v1233 = vadd.f32 0.0, %v1232
    %v1234 = vpop.f32.mrf.mxu0
    %1235 = vdwg.mxu0
    %v1237 = vsel %vm640, %v1122, 0
    %1239 = vmatpush.bf16.msra.mxu0 0
    %1240 = vmatpush.bf16.msra.mxu0 0
    %1241 = vmatpush.bf16.msra.mxu0 0
    %1242 = vmatpush.bf16.msra.mxu0 0
    %1243 = vmatpush.bf16.msra.mxu0 0
    %1244 = vmatpush.bf16.msra.mxu0 0
    %1245 = vmatpush.bf16.msra.mxu0 0
    %1246 = vmatpush.bf16.msra.mxu0 %v1170
    %1247 = vmatmul.bf16.gmra.mxu0 %v1237
    %v1248 = vpop.f32.mrf.mxu0
    %v1249 = vadd.f32 0.0, %v1248
    %v1250 = vpop.f32.mrf.mxu0
    %1251 = vdwg.mxu0
    %v1253 = vsel %vm640, %v1123, 0
    %1255 = vmatpush.bf16.msra.mxu0 0
    %1256 = vmatpush.bf16.msra.mxu0 0
    %1257 = vmatpush.bf16.msra.mxu0 0
    %1258 = vmatpush.bf16.msra.mxu0 0
    %1259 = vmatpush.bf16.msra.mxu0 0
    %1260 = vmatpush.bf16.msra.mxu0 0
    %1261 = vmatpush.bf16.msra.mxu0 0
    %1262 = vmatpush.bf16.msra.mxu0 %v1189
    %1263 = vmatmul.bf16.gmra.mxu0 %v1253
    %v1264 = vpop.f32.mrf.mxu0
    %v1265 = vadd.f32 0.0, %v1264
    %v1266 = vpop.f32.mrf.mxu0
    %1267 = vdwg.mxu0
    %v1268 = vsel %vm109, %v1144, 0.0
    %v1269 = vsel %vm109, %v1163, 0.0
    %v1270 = vadd.f32 %v1268, %v1269
    %v1271 = vsel %vm109, %v1182, 0.0
    %v1272 = vadd.f32 %v1270, %v1271
    %v1273 = vsel %vm109, %v1201, 0.0
    %v1274 = vadd.f32 %v1272, %v1273
    %v1275 = vsel %vm109, %v1217, 0.0
    %v1276 = vsel %vm109, %v1233, 0.0
    %v1277 = vadd.f32 %v1275, %v1276
    %v1278 = vsel %vm109, %v1249, 0.0
    %v1279 = vadd.f32 %v1277, %v1278
    %v1280 = vsel %vm109, %v1265, 0.0
    %v1281 = vadd.f32 %v1279, %v1280
    %v1282 = vld [vmem:[%s9] sm:$0x1]
    %v1284 = vperm.slane %v1282, 0
    %v1286 = vadd.f32 %v1274, %v1284
    %v1287 = vadd.f32 %v1281, %v1284
    %v1288 = vadd.f32 %v61, %v1286
    %v1289 = vadd.f32 %v62, %v1287
    %v1290 = vsel %vm109, %v1288, 0.0
    %1291 = vadd.xlane.f32.xlu0 %v1290
    %v1292 = vpop.xlane.xlu0 %1291
    %v1293 = vsel %vm109, %v1289, 0.0
    %1294 = vadd.xlane.f32.xlu0 %v1293
    %v1295 = vpop.xlane.xlu0 %1294
    %v1296 = vrcp.pop 32.0
    %v1297 = vmul.f32 32.0, %v1296
    %v1298 = vsub.f32 1.0, %v1297
    %v1299 = vmul.f32 %v1296, %v1298
    %v1300 = vadd.f32 %v1296, %v1299
    %vm1301 = vweird.f32 %v1296
    %v1302 = vsel %vm1301, %v1296, %v1300
    %v1303 = vmul.f32 %v1292, %v1302
    %v1304 = vmul.f32 %v1295, %v1302
    %v1305 = vsub.f32 %v1288, %v1303
    %v1306 = vsub.f32 %v1289, %v1304
    %v1307 = vmul.f32 %v1305, %v1305
    %v1308 = vmul.f32 %v1306, %v1306
    %v1309 = vsel %vm109, %v1307, 0.0
    %1310 = vadd.xlane.f32.xlu0 %v1309
    %v1311 = vpop.xlane.xlu0 %1310
    %v1312 = vsel %vm109, %v1308, 0.0
    %1313 = vadd.xlane.f32.xlu0 %v1312
    %v1314 = vpop.xlane.xlu0 %1313
    %v1315 = vmul.f32 %v1311, %v1302
    %v1316 = vmul.f32 %v1314, %v1302
    %v1317 = vadd.f32 %v1315, 1e-05
    %v1318 = vadd.f32 %v1316, 1e-05
    %v1319 = vrsqrt.pop %v1317
    %v1320 = vmul.f32 %v1319, %v1317
    %v1321 = vmul.f32 %v1320, %v1319
    %v1322 = vmul.f32 0.5, %v1321
    %v1323 = vsub.f32 1.5, %v1322
    %v1324 = vmul.f32 %v1319, %v1323
    %vm1325 = vweird.f32 %v1317
    %vm1326 = vweird.f32 %v1319
    %vm1327 = vmor %vm1325, %vm1326
    %v1328 = vsel %vm1327, %v1319, %v1324
    %v1329 = vrsqrt.pop %v1318
    %v1330 = vmul.f32 %v1329, %v1318
    %v1331 = vmul.f32 %v1330, %v1329
    %v1332 = vmul.f32 0.5, %v1331
    %v1333 = vsub.f32 1.5, %v1332
    %v1334 = vmul.f32 %v1329, %v1333
    %vm1335 = vweird.f32 %v1318
    %vm1336 = vweird.f32 %v1329
    %vm1337 = vmor %vm1335, %vm1336
    %v1338 = vsel %vm1337, %v1329, %v1334
    %v1339 = vmul.f32 %v1305, %v1328
    %v1340 = vmul.f32 %v1306, %v1338
    %v1341 = vld [vmem:[%s10] sm:$0x1]
    %v1343 = vperm.slane %v1341, 0
    %v1345 = vmul.f32 %v1339, %v1343
    %v1346 = vmul.f32 %v1340, %v1343
    %v1347 = vld [vmem:[%s11] sm:$0x1]
    %v1349 = vperm.slane %v1347, 0
    %v1351 = vadd.f32 %v1345, %v1349
    %v1352 = vadd.f32 %v1346, %v1349
    %v1353 = vpack.c.bf16 %v1352, %v1351
    %v1354 = vld [vmem:[%s12] sm:$0xf]
    %v1355 = vld [vmem:[%s12 + $0x4] sm:$0xf]
    %v1356 = vld [vmem:[%s12 + $0x8] sm:$0xf]
    %v1357 = vld [vmem:[%s12 + $0xc] sm:$0xf]
    %v1358 = vld [vmem:[%s13] sm:$0x1]
    %v1360 = vperm.slane %v1358, 0
    %v1366 = vunpack.c.l.b16 %v1354
    %v1367 = vunpack.c.l.b16 %v1355
    %v1368 = vunpack.c.l.b16 %v1356
    %v1369 = vunpack.c.l.b16 %v1357
    %v1370 = vpack.c.b16 %v1367, %v1366
    %v1371 = vpack.c.b16 %v1369, %v1368
    %v1375 = vsel %vm109, %v1353, 0
    %1377 = vmatpush.bf16.msra.mxu0 0
    %1378 = vmatpush.bf16.msra.mxu0 0
    %1379 = vmatpush.bf16.msra.mxu0 0
    %1380 = vmatpush.bf16.msra.mxu0 0
    %1381 = vmatpush.bf16.msra.mxu0 0
    %1382 = vmatpush.bf16.msra.mxu0 0
    %1383 = vmatpush.bf16.msra.mxu0 %v1371
    %1384 = vmatpush.bf16.msra.mxu0 %v1370
    %1385 = vmatmul.bf16.gmra.mxu0 %v1375
    %v1386 = vpop.f32.mrf.mxu0
    %v1387 = vadd.f32 %v1360, %v1386
    %v1388 = vpop.f32.mrf.mxu0
    %v1389 = vadd.f32 %v1360, %v1388
    %1390 = vdwg.mxu0
    %v1391 = vmax.f32 %v1387, 0.0
    %v1392 = vmax.f32 %v1389, 0.0
    %v1393 = vpack.c.bf16 %v1392, %v1391
    %v1394 = vld [vmem:[%s14] sm:$0xf]
    %v1395 = vld [vmem:[%s14 + $0x4] sm:$0xf]
    %v1396 = vld [vmem:[%s14 + $0x8] sm:$0xf]
    %v1397 = vld [vmem:[%s14 + $0xc] sm:$0xf]
    %v1398 = vld [vmem:[%s14 + $0x10] sm:$0xf]
    %v1399 = vld [vmem:[%s14 + $0x14] sm:$0xf]
    %v1400 = vld [vmem:[%s14 + $0x18] sm:$0xf]
    %v1401 = vld [vmem:[%s14 + $0x1c] sm:$0xf]
    %v1402 = vld [vmem:[%s15] sm:$0x1]
    %v1404 = vperm.slane %v1402, 0
    %v1414 = vunpack.c.l.b16 %v1394
    %v1415 = vunpack.c.l.b16 %v1395
    %v1416 = vunpack.c.l.b16 %v1396
    %v1417 = vunpack.c.l.b16 %v1397
    %v1418 = vunpack.c.l.b16 %v1398
    %v1419 = vunpack.c.l.b16 %v1399
    %v1420 = vunpack.c.l.b16 %v1400
    %v1421 = vunpack.c.l.b16 %v1401
    %v1422 = vpack.c.b16 %v1415, %v1414
    %v1423 = vpack.c.b16 %v1417, %v1416
    %v1424 = vpack.c.b16 %v1419, %v1418
    %v1425 = vpack.c.b16 %v1421, %v1420
    %vm1430 = vcmask 523264
    %v1432 = vsel %vm1430, %v1393, 0
    %1434 = vmatpush.bf16.msra.mxu0 0
    %1435 = vmatpush.bf16.msra.mxu0 0
    %1436 = vmatpush.bf16.msra.mxu0 0
    %1437 = vmatpush.bf16.msra.mxu0 0
    %1438 = vmatpush.bf16.msra.mxu0 %v1425
    %1439 = vmatpush.bf16.msra.mxu0 %v1424
    %1440 = vmatpush.bf16.msra.mxu0 %v1423
    %1441 = vmatpush.bf16.msra.mxu0 %v1422
    %1442 = vmatmul.bf16.gmra.mxu0 %v1432
    %v1443 = vpop.f32.mrf.mxu0
    %v1444 = vadd.f32 %v1404, %v1443
    %v1445 = vpop.f32.mrf.mxu0
    %v1446 = vadd.f32 %v1404, %v1445
    %1447 = vdwg.mxu0
    %v1448 = vadd.f32 %v1351, %v1444
    %v1449 = vadd.f32 %v1352, %v1446
    %v1450 = vsel %vm109, %v1448, 0.0
    %1451 = vadd.xlane.f32.xlu0 %v1450
    %v1452 = vpop.xlane.xlu0 %1451
    %v1453 = vsel %vm109, %v1449, 0.0
    %1454 = vadd.xlane.f32.xlu0 %v1453
    %v1455 = vpop.xlane.xlu0 %1454
    %v1456 = vmul.f32 %v1452, %v1302
    %v1457 = vmul.f32 %v1455, %v1302
    %v1458 = vsub.f32 %v1448, %v1456
    %v1459 = vsub.f32 %v1449, %v1457
    %v1460 = vmul.f32 %v1458, %v1458
    %v1461 = vmul.f32 %v1459, %v1459
    %v1462 = vsel %vm109, %v1460, 0.0
    %1463 = vadd.xlane.f32.xlu0 %v1462
    %v1464 = vpop.xlane.xlu0 %1463
    %v1465 = vsel %vm109, %v1461, 0.0
    %1466 = vadd.xlane.f32.xlu0 %v1465
    %v1467 = vpop.xlane.xlu0 %1466
    %v1468 = vmul.f32 %v1464, %v1302
    %v1469 = vmul.f32 %v1467, %v1302
    %v1470 = vadd.f32 %v1468, 1e-05
    %v1471 = vadd.f32 %v1469, 1e-05
    %v1472 = vrsqrt.pop %v1470
    %v1473 = vmul.f32 %v1472, %v1470
    %v1474 = vmul.f32 %v1473, %v1472
    %v1475 = vmul.f32 0.5, %v1474
    %v1476 = vsub.f32 1.5, %v1475
    %v1477 = vmul.f32 %v1472, %v1476
    %vm1478 = vweird.f32 %v1470
    %vm1479 = vweird.f32 %v1472
    %vm1480 = vmor %vm1478, %vm1479
    %v1481 = vsel %vm1480, %v1472, %v1477
    %v1482 = vrsqrt.pop %v1471
    %v1483 = vmul.f32 %v1482, %v1471
    %v1484 = vmul.f32 %v1483, %v1482
    %v1485 = vmul.f32 0.5, %v1484
    %v1486 = vsub.f32 1.5, %v1485
    %v1487 = vmul.f32 %v1482, %v1486
    %vm1488 = vweird.f32 %v1471
    %vm1489 = vweird.f32 %v1482
    %vm1490 = vmor %vm1488, %vm1489
    %v1491 = vsel %vm1490, %v1482, %v1487
    %v1492 = vmul.f32 %v1458, %v1481
    %v1493 = vmul.f32 %v1459, %v1491
    %v1494 = vld [vmem:[%s16] sm:$0x1]
    %v1496 = vperm.slane %v1494, 0
    %v1498 = vmul.f32 %v1492, %v1496
    %v1499 = vmul.f32 %v1493, %v1496
    %v1500 = vld [vmem:[%s17] sm:$0x1]
    %v1502 = vperm.slane %v1500, 0
    %v1504 = vadd.f32 %v1498, %v1502
    %v1505 = vadd.f32 %v1499, %v1502
    %1506 = vst.msk [vmem:[#allocation2] sm:$0xff] %vm109, %v1504
    %1507 = vst.msk [vmem:[#allocation2 + $0x8] sm:$0xff] %vm109, %v1505
    // Predicated region
    $region74: #{tpu_custom_call.1} parent=1 // pred_check
      _
    $region75: #{tpu_custom_call.1} parent=1 // pred_check_branch
      %1509 = sbr.rel (0) target = $region77
    $region76: #{tpu_custom_call.1} parent=1 // pred_region
      %1511 = vsyncadd [#allocation3], 0
      %s1512 = sshll.u32 [#allocation2], 4
      %s1513 = int_to_ptr.vmem [resolvable:$true] %s1512
      %s1514 = sshll.u32 %s18, 4
      %s1515 = int_to_ptr.hbm [resolvable:$true] %s1514
      %1520 = dma.vmem_to_hbm [thread:$0]  %s1513, 256, %s1515, [#allocation3], 128, 128, 8
    $region77: #{tpu_custom_call.1} parent=1 // pred_fallthru
      _
    // Predicated region
    $region78: #{tpu_custom_call.1} parent=1 // pred_check
      _
    $region79: #{tpu_custom_call.1} parent=1 // pred_check_branch
      %1522 = sbr.rel (0) target = $region81
    $region80: #{tpu_custom_call.1} parent=1 // pred_region
      %1524 = dma.done [#allocation3], 256
    $region81: #{tpu_custom_call.1} parent=1 // pred_fallthru
      _
    %1525 = vsyncpa [#allocation3], 1

</llo_original>
